<compile_context>
chip_gen: v7x
topology: tpu7x:2x2x1
jax: 0.10.0
libtpu: 0.0.40
codegen_flags: <defaults>
</compile_context>

<pallas_src>
import functools

import jax
import jax.numpy as jnp
import numpy as np
from jax.experimental import pallas as pl
from jax.experimental.pallas import tpu as pltpu

EPS = 1e-15


def _attnwalk_kernel(attn_sref, tgt_ref, adjopp_ref, left_ref, right_ref,
                     pos_ref, neg_ref):
    j = pl.program_id(1)

    # Per-row-tile accumulators (output blocks resident across the j axis).
    @pl.when(j == 0)
    def _():
        pos_ref[...] = jnp.zeros_like(pos_ref)
        neg_ref[...] = jnp.zeros_like(neg_ref)

    # Logits for this tile: bf16 MXU matmul, f32 accumulation.
    z = jnp.dot(left_ref[...], right_ref[...],
                preferred_element_type=jnp.float32)

    # log-sigmoid / softplus identity:
    #   pred        = sigmoid(z)
    #   log(pred)   = z - softplus(z)
    #   log(1-pred) = -softplus(z)
    # softplus(z) = max(z,0) + log(1 + exp(-|z|))  (stable; 1 exp + 1 log).
    # The max(..., log(EPS)) reproduces the intent of clamp(pred, EPS, 1-EPS)
    # without the f32 "1 - EPS == 1" -inf hazard of the literal formula.
    sp = jnp.maximum(z, 0.0) + jnp.log(1.0 + jnp.exp(-jnp.abs(z)))
    log_eps = jnp.float32(np.log(EPS))
    log_pred = jnp.maximum(z - sp, log_eps)
    log_1mpred = jnp.maximum(-sp, log_eps)

    # target_mat tile = sum_w attn[w] * target_tensor[w, tile]
    # attn scalars live in SMEM -> each term is a cheap scalar*vreg multiply.
    W = tgt_ref.shape[0]
    tmat = attn_sref[0] * tgt_ref[0].astype(jnp.float32)
    for w in range(1, W):
        tmat = tmat + attn_sref[w] * tgt_ref[w].astype(jnp.float32)

    adj_opp = adjopp_ref[...].astype(jnp.float32)   # int8 -> f32 in-kernel

    # Scalar partial sums broadcast-accumulated into the lane-dense (1,8,128)
    # per-row-tile output block (every lane carries the same value).
    pos_ref[...] += jnp.sum(tmat * log_pred)
    neg_ref[...] += jnp.sum(adj_opp * log_1mpred)


def attnwalk_loss(target_tensor, adj_opposite, left, right, attn_weights,
                  *, walk_length, beta, gamma, tm=256, tn=512):
    W, N, _ = target_tensor.shape
    H = left.shape[1]

    # Tiles capped at N; exact tiling required (no remainder handling).
    tm = min(tm, N)
    tn = min(tn, N)
    if N % tm or N % tn:
        raise ValueError(
            f"N={N} must be divisible by tile sizes (tm={tm}, tn={tn})")

    # Glue: softmax over the W attention scalars (W is tiny, e.g. 5).
    attn = jax.nn.softmax(attn_weights.reshape(W).astype(jnp.float32), axis=0)

    # Dominant HBM stream in bf16. Callers should pre-store target_tensor as
    # bf16 so this astype is a no-op under jit.
    tgt = target_tensor.astype(jnp.bfloat16)

    # adj_opposite: keep 1 byte/elem. Only touch it if it arrives as bool.
    adj_opp = adj_opposite
    if adj_opp.dtype == jnp.bool_:
        adj_opp = adj_opp.astype(jnp.int8)

    # bf16 embeddings for a single-pass MXU matmul (f32 accumulate in-kernel).
    left_bf = left.astype(jnp.bfloat16)
    right_bf = right.astype(jnp.bfloat16)

    gi, gj = N // tm, N // tn

    # Per-step VMEM footprint (double-buffered) with bf16 target + int8 adj is
    # only a few MiB even at (256,512), so the default scoped VMEM limit is
    # fine on v5e/v6e/v7x.
    pos_part, neg_part = pl.pallas_call(
        _attnwalk_kernel,
        out_shape=(jax.ShapeDtypeStruct((gi, 8, 128), jnp.float32),
                   jax.ShapeDtypeStruct((gi, 8, 128), jnp.float32)),
        grid_spec=pltpu.PrefetchScalarGridSpec(
            num_scalar_prefetch=1,            # attn -> SMEM
            grid=(gi, gj),
            in_specs=[
                pl.BlockSpec((W, tm, tn), lambda i, j, attn: (0, i, j)),  # target bf16
                pl.BlockSpec((tm, tn), lambda i, j, attn: (i, j)),        # adj_opp int8
                pl.BlockSpec((tm, H), lambda i, j, attn: (i, 0)),         # left bf16
                pl.BlockSpec((H, tn), lambda i, j, attn: (0, j)),         # right bf16
            ],
            out_specs=[
                pl.BlockSpec((1, 8, 128), lambda i, j, attn: (i, 0, 0)),  # pos partials
                pl.BlockSpec((1, 8, 128), lambda i, j, attn: (i, 0, 0)),  # neg partials
            ],
        ),
        compiler_params=pltpu.CompilerParams(
            dimension_semantics=("parallel", "arbitrary")),
    )(attn, tgt, adj_opp, left_bf, right_bf)

    # Glue: reduce the tiny per-row-tile partials and combine scalars.
    denom = jnp.float32(N) * jnp.float32(N)
    pos_loss = -jnp.sum(pos_part[:, 0, 0]) / denom
    neg_loss = -jnp.sum(neg_part[:, 0, 0]) / denom
    nlgl = walk_length * N * pos_loss + neg_loss
    attn_reg = jnp.sum(attn_weights.astype(jnp.float32) ** 2)
    if gamma > 0:
        return nlgl + beta * attn_reg
    emb_reg = jnp.mean(jnp.abs(left)) + jnp.mean(jnp.abs(right))
    return nlgl + beta * attn_reg + gamma * emb_reg


def _reference_loss(target_tensor, adj_opposite, left, right, attn_weights,
                    *, walk_length, beta, gamma):
    W = target_tensor.shape[0]
    attn = jax.nn.softmax(attn_weights.reshape(W), axis=0).reshape(W, 1, 1)
    target_mat = jnp.sum(target_tensor * attn, axis=0)
    pred = jnp.clip(jax.nn.sigmoid(left @ right), EPS, 1.0 - EPS)
    pos_loss = -jnp.mean(target_mat * jnp.log(pred))
    neg_loss = -jnp.mean(adj_opposite.astype(jnp.float32) * jnp.log(1.0 - pred))
    nlgl = walk_length * target_mat.shape[0] * pos_loss + neg_loss
    attn_reg = jnp.sum(attn_weights ** 2)
    if gamma > 0:
        return nlgl + beta * attn_reg
    emb_reg = jnp.mean(jnp.abs(left)) + jnp.mean(jnp.abs(right))
    return nlgl + beta * attn_reg + gamma * emb_reg


if __name__ == "__main__":
    # Small-but-tileable synthetic problem: N=256 nodes, dim=32 (half_dim=16),
    # window_size=5, walk_length=16, beta=gamma=0.5.
    N = 256
    dim = 32
    half_dim = dim // 2
    window_size = 5
    walk_length = 16
    beta = 0.5
    gamma = 0.5

    key = jax.random.PRNGKey(0)
    k_adj, k_left, k_right, k_attn = jax.random.split(key, 4)

    # Deterministic synthetic graph adjacency (prepare_features equivalent).
    r = jax.random.uniform(k_adj, (N, N), dtype=jnp.float32)
    r = (r + r.T) * 0.5
    adj = (r > 0.9).astype(jnp.float32)
    adj = adj * (1.0 - jnp.eye(N, dtype=jnp.float32))
    # Ring edges guarantee every node has degree > 0.
    ring = jnp.eye(N, dtype=jnp.float32)
    ring = jnp.roll(ring, 1, axis=1) + jnp.roll(ring, -1, axis=1)
    adj = jnp.clip(adj + ring, 0.0, 1.0)

    inv_sqrt_degs = 1.0 / jnp.sqrt(jnp.sum(adj, axis=0, keepdims=True))
    norm_adj = adj * inv_sqrt_degs * inv_sqrt_degs.T
    powers = [norm_adj]
    for _ in range(window_size - 1):
        powers.append(powers[-1] @ norm_adj)
    target_f32 = jnp.stack(powers, axis=0)            # (W, N, N) f32 (reference)
    target_bf16 = target_f32.astype(jnp.bfloat16)     # kernel-side storage
    adj_opposite = (adj == 0).astype(jnp.int8)        # (N, N) 1 byte / elem

    # Parameters, uniform(-0.01, 0.01) like nn.init.uniform_.
    left = jax.random.uniform(k_left, (N, half_dim), jnp.float32, -0.01, 0.01)
    right = jax.random.uniform(k_right, (half_dim, N), jnp.float32, -0.01, 0.01)
    attn_weights = jax.random.uniform(k_attn, (window_size, 1, 1),
                                      jnp.float32, -0.01, 0.01)

    loss_fn = jax.jit(functools.partial(
        attnwalk_loss, walk_length=walk_length, beta=beta, gamma=gamma))
    loss = loss_fn(target_bf16, adj_opposite, left, right, attn_weights)
    loss = jax.block_until_ready(loss)

    ref = _reference_loss(target_f32, adj_opposite, left, right,
                          attn_weights, walk_length=walk_length,
                          beta=beta, gamma=gamma)
    # bf16 target/embeddings in the kernel vs f32 reference: small relaxed tol.
    np.testing.assert_allclose(np.asarray(loss), np.asarray(ref),
                               rtol=2e-3, atol=2e-3)
    print("KERNEL_OK")
</pallas_src>

<mosaic_0001>
module attributes {stable_mosaic.version = 11 : i64} {
  func.func @_attnwalk_kernel(%arg0: i32, %arg1: i32, %arg2: memref<5xf32, #tpu.memory_space<smem>>, %arg3: memref<5x256x256xbf16, #tpu.memory_space<vmem>>, %arg4: memref<256x256xi8, #tpu.memory_space<vmem>>, %arg5: memref<256x16xbf16, #tpu.memory_space<vmem>>, %arg6: memref<16x256xbf16, #tpu.memory_space<vmem>>, %arg7: memref<1x8x128xf32, #tpu.memory_space<vmem>>, %arg8: memref<1x8x128xf32, #tpu.memory_space<vmem>>) attributes {dimension_semantics = [#tpu.dimension_semantics<parallel>, #tpu.dimension_semantics<arbitrary>], iteration_bounds = array<i64: 1, 1>, scalar_prefetch = 1 : i64, scratch_operands = 0 : i64, tpu.core_type = #tpu.core_type<tc>, window_params = [{transform_indices = @transform_0, window_bounds = array<i64: 5, 256, 256>}, {transform_indices = @transform_1, window_bounds = array<i64: 256, 256>}, {transform_indices = @transform_2, window_bounds = array<i64: 256, 16>}, {transform_indices = @transform_3, window_bounds = array<i64: 16, 256>}, {transform_indices = @transform_4, window_bounds = array<i64: 1, 8, 128>}, {transform_indices = @transform_5, window_bounds = array<i64: 1, 8, 128>}]} {
    %c0_i32 = arith.constant 0 : i32
    %0 = arith.cmpi eq, %arg1, %c0_i32 : i32
    %1 = arith.extui %0 : i1 to i32
    %c0_i32_0 = arith.constant 0 : i32
    %2 = arith.cmpi ne, %1, %c0_i32_0 : i32
    scf.if %2 {
      %cst_42 = arith.constant 0.000000e+00 : f32
      %77 = vector.broadcast %cst_42 : f32 to vector<1x8x128xf32>
      %c0_43 = arith.constant 0 : index
      %c0_44 = arith.constant 0 : index
      %c0_45 = arith.constant 0 : index
      %78 = vector.load %arg7[%c0_43, %c0_44, %c0_45] : memref<1x8x128xf32, #tpu.memory_space<vmem>>, vector<1x8x128xf32>
      tpu.vector_store %arg7[%c0_43, %c0_44, %c0_45], %77 {strides = array<i32>} : memref<1x8x128xf32, #tpu.memory_space<vmem>>, vector<1x8x128xf32>,
      %cst_46 = arith.constant 0.000000e+00 : f32
      %79 = vector.broadcast %cst_46 : f32 to vector<1x8x128xf32>
      %c0_47 = arith.constant 0 : index
      %c0_48 = arith.constant 0 : index
      %c0_49 = arith.constant 0 : index
      %80 = vector.load %arg8[%c0_47, %c0_48, %c0_49] : memref<1x8x128xf32, #tpu.memory_space<vmem>>, vector<1x8x128xf32>
      tpu.vector_store %arg8[%c0_47, %c0_48, %c0_49], %79 {strides = array<i32>} : memref<1x8x128xf32, #tpu.memory_space<vmem>>, vector<1x8x128xf32>,
    } else {
    }
    %c0 = arith.constant 0 : index
    %c0_1 = arith.constant 0 : index
    %3 = vector.load %arg5[%c0, %c0_1] : memref<256x16xbf16, #tpu.memory_space<vmem>>, vector<256x16xbf16>
    %c0_2 = arith.constant 0 : index
    %c0_3 = arith.constant 0 : index
    %4 = vector.load %arg6[%c0_2, %c0_3] : memref<16x256xbf16, #tpu.memory_space<vmem>>, vector<16x256xbf16>
    %cst = arith.constant dense<0.000000e+00> : vector<256x256xf32>
    %5 = tpu.matmul %3, %4, %cst {dimension_numbers = #tpu.dot_dimension_numbers<[1], [0], [0], [1], [0, 0, 1, 1], [], []>} : vector<256x16xbf16>, vector<16x256xbf16>, vector<256x256xf32> -> vector<256x256xf32>
    %cst_4 = arith.constant 0.000000e+00 : f32
    %6 = vector.broadcast %cst_4 : f32 to vector<256x256xf32>
    %7 = arith.maximumf %5, %6 : vector<256x256xf32>
    %8 = math.absf %5 : vector<256x256xf32>
    %cst_5 = arith.constant 0.000000e+00 : f32
    %9 = vector.broadcast %cst_5 : f32 to vector<256x256xf32>
    %10 = arith.subf %9, %8 : vector<256x256xf32>
    %11 = math.exp %10 : vector<256x256xf32>
    %cst_6 = arith.constant 1.000000e+00 : f32
    %12 = vector.broadcast %cst_6 : f32 to vector<256x256xf32>
    %13 = arith.addf %12, %11 : vector<256x256xf32>
    %14 = math.log %13 : vector<256x256xf32>
    %15 = arith.addf %7, %14 : vector<256x256xf32>
    %16 = arith.subf %5, %15 : vector<256x256xf32>
    %cst_7 = arith.constant -34.5387764 : f32
    %17 = vector.broadcast %cst_7 : f32 to vector<256x256xf32>
    %18 = arith.maximumf %16, %17 : vector<256x256xf32>
    %cst_8 = arith.constant 0.000000e+00 : f32
    %19 = vector.broadcast %cst_8 : f32 to vector<256x256xf32>
    %20 = arith.subf %19, %15 : vector<256x256xf32>
    %cst_9 = arith.constant -34.5387764 : f32
    %21 = vector.broadcast %cst_9 : f32 to vector<256x256xf32>
    %22 = arith.maximumf %20, %21 : vector<256x256xf32>
    %c0_10 = arith.constant 0 : index
    %23 = memref.load %arg2[%c0_10] : memref<5xf32, #tpu.memory_space<smem>>
    %c0_11 = arith.constant 0 : index
    %c0_12 = arith.constant 0 : index
    %c0_13 = arith.constant 0 : index
    %24 = vector.load %arg3[%c0_11, %c0_12, %c0_13] : memref<5x256x256xbf16, #tpu.memory_space<vmem>>, vector<1x256x256xbf16>
    %25 = vector.shape_cast %24 : vector<1x256x256xbf16> to vector<256x256xbf16>
    %26 = arith.extf %25 : vector<256x256xbf16> to vector<256x256xf32>
    %27 = vector.broadcast %23 : f32 to vector<256x256xf32>
    %28 = arith.mulf %27, %26 : vector<256x256xf32>
    %c1 = arith.constant 1 : index
    %29 = memref.load %arg2[%c1] : memref<5xf32, #tpu.memory_space<smem>>
    %c1_14 = arith.constant 1 : index
    %c0_15 = arith.constant 0 : index
    %c0_16 = arith.constant 0 : index
    %30 = vector.load %arg3[%c1_14, %c0_15, %c0_16] : memref<5x256x256xbf16, #tpu.memory_space<vmem>>, vector<1x256x256xbf16>
    %31 = vector.shape_cast %30 : vector<1x256x256xbf16> to vector<256x256xbf16>
    %32 = arith.extf %31 : vector<256x256xbf16> to vector<256x256xf32>
    %33 = vector.broadcast %29 : f32 to vector<256x256xf32>
    %34 = arith.mulf %33, %32 : vector<256x256xf32>
    %35 = arith.addf %28, %34 : vector<256x256xf32>
    %c2 = arith.constant 2 : index
    %36 = memref.load %arg2[%c2] : memref<5xf32, #tpu.memory_space<smem>>
    %c2_17 = arith.constant 2 : index
    %c0_18 = arith.constant 0 : index
    %c0_19 = arith.constant 0 : index
    %37 = vector.load %arg3[%c2_17, %c0_18, %c0_19] : memref<5x256x256xbf16, #tpu.memory_space<vmem>>, vector<1x256x256xbf16>
    %38 = vector.shape_cast %37 : vector<1x256x256xbf16> to vector<256x256xbf16>
    %39 = arith.extf %38 : vector<256x256xbf16> to vector<256x256xf32>
    %40 = vector.broadcast %36 : f32 to vector<256x256xf32>
    %41 = arith.mulf %40, %39 : vector<256x256xf32>
    %42 = arith.addf %35, %41 : vector<256x256xf32>
    %c3 = arith.constant 3 : index
    %43 = memref.load %arg2[%c3] : memref<5xf32, #tpu.memory_space<smem>>
    %c3_20 = arith.constant 3 : index
    %c0_21 = arith.constant 0 : index
    %c0_22 = arith.constant 0 : index
    %44 = vector.load %arg3[%c3_20, %c0_21, %c0_22] : memref<5x256x256xbf16, #tpu.memory_space<vmem>>, vector<1x256x256xbf16>
    %45 = vector.shape_cast %44 : vector<1x256x256xbf16> to vector<256x256xbf16>
    %46 = arith.extf %45 : vector<256x256xbf16> to vector<256x256xf32>
    %47 = vector.broadcast %43 : f32 to vector<256x256xf32>
    %48 = arith.mulf %47, %46 : vector<256x256xf32>
    %49 = arith.addf %42, %48 : vector<256x256xf32>
    %c4 = arith.constant 4 : index
    %50 = memref.load %arg2[%c4] : memref<5xf32, #tpu.memory_space<smem>>
    %c4_23 = arith.constant 4 : index
    %c0_24 = arith.constant 0 : index
    %c0_25 = arith.constant 0 : index
    %51 = vector.load %arg3[%c4_23, %c0_24, %c0_25] : memref<5x256x256xbf16, #tpu.memory_space<vmem>>, vector<1x256x256xbf16>
    %52 = vector.shape_cast %51 : vector<1x256x256xbf16> to vector<256x256xbf16>
    %53 = arith.extf %52 : vector<256x256xbf16> to vector<256x256xf32>
    %54 = vector.broadcast %50 : f32 to vector<256x256xf32>
    %55 = arith.mulf %54, %53 : vector<256x256xf32>
    %56 = arith.addf %49, %55 : vector<256x256xf32>
    %c0_26 = arith.constant 0 : index
    %c0_27 = arith.constant 0 : index
    %57 = vector.load %arg4[%c0_26, %c0_27] : memref<256x256xi8, #tpu.memory_space<vmem>>, vector<256x256xi8>
    %58 = arith.sitofp %57 : vector<256x256xi8> to vector<256x256xf32>
    %c0_28 = arith.constant 0 : index
    %c0_29 = arith.constant 0 : index
    %c0_30 = arith.constant 0 : index
    %59 = vector.load %arg7[%c0_28, %c0_29, %c0_30] : memref<1x8x128xf32, #tpu.memory_space<vmem>>, vector<1x8x128xf32>
    %60 = arith.mulf %56, %18 : vector<256x256xf32>
    %61 = vector.shape_cast %60 : vector<256x256xf32> to vector<1x256x256xf32>
    %cst_31 = arith.constant dense<0.000000e+00> : vector<1xf32>
    %62 = vector.multi_reduction <add>, %61, %cst_31 [1, 2] : vector<1x256x256xf32> to vector<1xf32>
    %63 = vector.shape_cast %62 : vector<1xf32> to vector<1x1x1xf32>
    %64 = vector.extract %63[0, 0, 0] : f32 from vector<1x1x1xf32>
    %65 = vector.broadcast %64 : f32 to vector<1x8x128xf32>
    %66 = arith.addf %59, %65 : vector<1x8x128xf32>
    %c0_32 = arith.constant 0 : index
    %c0_33 = arith.constant 0 : index
    %c0_34 = arith.constant 0 : index
    %67 = vector.load %arg7[%c0_32, %c0_33, %c0_34] : memref<1x8x128xf32, #tpu.memory_space<vmem>>, vector<1x8x128xf32>
    tpu.vector_store %arg7[%c0_32, %c0_33, %c0_34], %66 {strides = array<i32>} : memref<1x8x128xf32, #tpu.memory_space<vmem>>, vector<1x8x128xf32>,
    %c0_35 = arith.constant 0 : index
    %c0_36 = arith.constant 0 : index
    %c0_37 = arith.constant 0 : index
    %68 = vector.load %arg8[%c0_35, %c0_36, %c0_37] : memref<1x8x128xf32, #tpu.memory_space<vmem>>, vector<1x8x128xf32>
    %69 = arith.mulf %58, %22 : vector<256x256xf32>
    %70 = vector.shape_cast %69 : vector<256x256xf32> to vector<1x256x256xf32>
    %cst_38 = arith.constant dense<0.000000e+00> : vector<1xf32>
    %71 = vector.multi_reduction <add>, %70, %cst_38 [1, 2] : vector<1x256x256xf32> to vector<1xf32>
    %72 = vector.shape_cast %71 : vector<1xf32> to vector<1x1x1xf32>
    %73 = vector.extract %72[0, 0, 0] : f32 from vector<1x1x1xf32>
    %74 = vector.broadcast %73 : f32 to vector<1x8x128xf32>
    %75 = arith.addf %68, %74 : vector<1x8x128xf32>
    %c0_39 = arith.constant 0 : index
    %c0_40 = arith.constant 0 : index
    %c0_41 = arith.constant 0 : index
    %76 = vector.load %arg8[%c0_39, %c0_40, %c0_41] : memref<1x8x128xf32, #tpu.memory_space<vmem>>, vector<1x8x128xf32>
    tpu.vector_store %arg8[%c0_39, %c0_40, %c0_41], %75 {strides = array<i32>} : memref<1x8x128xf32, #tpu.memory_space<vmem>>, vector<1x8x128xf32>,
    return
  }
  func.func @transform_0(%arg0: i32, %arg1: i32, %arg2: memref<5xf32, #tpu.memory_space<smem>>) -> (i32, i32, i32) {
    %c0_i32 = arith.constant 0 : i32
    %c0_i32_0 = arith.constant 0 : i32
    return %c0_i32, %arg0, %arg1 : i32, i32, i32
  }
  func.func @transform_1(%arg0: i32, %arg1: i32, %arg2: memref<5xf32, #tpu.memory_space<smem>>) -> (i32, i32) {
    %c0_i32 = arith.constant 0 : i32
    return %arg0, %arg1 : i32, i32
  }
  func.func @transform_2(%arg0: i32, %arg1: i32, %arg2: memref<5xf32, #tpu.memory_space<smem>>) -> (i32, i32) {
    %c0_i32 = arith.constant 0 : i32
    %c0_i32_0 = arith.constant 0 : i32
    return %arg0, %c0_i32 : i32, i32
  }
  func.func @transform_3(%arg0: i32, %arg1: i32, %arg2: memref<5xf32, #tpu.memory_space<smem>>) -> (i32, i32) {
    %c0_i32 = arith.constant 0 : i32
    %c0_i32_0 = arith.constant 0 : i32
    return %c0_i32, %arg1 : i32, i32
  }
  func.func @transform_4(%arg0: i32, %arg1: i32, %arg2: memref<5xf32, #tpu.memory_space<smem>>) -> (i32, i32, i32) {
    %c0_i32 = arith.constant 0 : i32
    %c0_i32_0 = arith.constant 0 : i32
    %c0_i32_1 = arith.constant 0 : i32
    return %arg0, %c0_i32, %c0_i32_0 : i32, i32, i32
  }
  func.func @transform_5(%arg0: i32, %arg1: i32, %arg2: memref<5xf32, #tpu.memory_space<smem>>) -> (i32, i32, i32) {
    %c0_i32 = arith.constant 0 : i32
    %c0_i32_0 = arith.constant 0 : i32
    %c0_i32_1 = arith.constant 0 : i32
    return %arg0, %c0_i32, %c0_i32_0 : i32, i32, i32
  }
}

</mosaic_0001>

<llo_original>
// kernel: attnwalk_loss.1
$region0: #{attnwalk_loss.1}
  #allocation0 [shape = 'u32[]', space=smem, size = 0x4, offset = 0x4, fixed_abs, tag = 'smem constant byte address 0x4 - core index']
  #allocation1 [shape = 'u32[144,128]{1,0:T(1,128)}', space=vmem, size = 0x12000, scoped, tag = 'internal scratch']
  #allocation2 [shape = 's32[1]{0}', space=sflag, size = 0x4, scoped, tag = 'scoped memory for attnwalk_loss.1']
  #allocation3 [shape = 'u8[512]{0}', space=smem, size = 0x200, scoped, tag = 'prefetched SMEM operand 0']
  %s0 = inlined_call_operand.vmem [shape: f32[5], index: 0, kind: input, shape index: {}]
  %s1 = inlined_call_operand.hbm [shape: bf16[5,256,256], index: 1, kind: input, shape index: {}]
  %s2 = inlined_call_operand.vmem [shape: s8[256,256], index: 2, kind: input, shape index: {}]
  %s3 = inlined_call_operand.vmem [shape: bf16[256,16], index: 3, kind: input, shape index: {}]
  %s4 = inlined_call_operand.vmem [shape: bf16[16,256], index: 4, kind: input, shape index: {}]
  %s5 = inlined_call_operand.vmem [shape: f32[1,8,128], index: 5, kind: output, shape index: {0}]
  %s6 = inlined_call_operand.vmem [shape: f32[1,8,128], index: 6, kind: output, shape index: {1}]
  %7 = xla_tuple %s5, %s6
  %s8 = sld [smem:[#allocation0]]
  $region42: #{attnwalk_loss.1} parent=0
    _
  %s10 = ssub.s32 1, %s8
  %s11 = scalar_select 0, %s10, %s8
  %s12 = sshll.u32 %s0, 4
  %s13 = int_to_ptr.vmem [resolvable:$true] %s12
  %15 = dma.vmem_to_smem %s13, 16, [#allocation3], [#allocation2]
  %16 = dma.done [#allocation2], 16
  %17 = sfence
  $region1: #{attnwalk_loss.1} parent=0
    #allocation4 [shape = 'u8[655360]{0}', space=vmem, size = 0xa0000, scoped, tag = 'input window, operand 1, single buffered']
    #allocation5 [shape = 's32[1]{0}', space=sflag, size = 0x4, scoped, tag = 'scoped memory for attnwalk_loss.1']
    %18 = vsyncpa [#allocation5], 0
    // Predicated region
    $region2: #{attnwalk_loss.1} parent=1 // pred_check
      _
    $region3: #{attnwalk_loss.1} parent=1 // pred_check_branch
      %20 = sbr.rel (0) target = $region5
    $region4: #{attnwalk_loss.1} parent=1 // pred_region
      %s22 = ssub.s32 20480, 20480
      %23 = vsyncadd [#allocation5], %s22
      %s24 = sshll.u32 [#allocation4], 4
      %s25 = int_to_ptr.vmem [resolvable:$true] %s24
      %30 = dma.hbm_to_vmem [thread:$0]  %s1, 20480, %s25, [#allocation5], 128, 128, 8
    $region5: #{attnwalk_loss.1} parent=1 // pred_fallthru
      _
    // Predicated region
    $region6: #{attnwalk_loss.1} parent=1 // pred_check
      _
    $region7: #{attnwalk_loss.1} parent=1 // pred_check_branch
      %32 = sbr.rel (0) target = $region9
    $region8: #{attnwalk_loss.1} parent=1 // pred_region
      _
    $region9: #{attnwalk_loss.1} parent=1 // pred_fallthru
      _
    // Predicated region
    $region10: #{attnwalk_loss.1} parent=1 // pred_check
      _
    $region11: #{attnwalk_loss.1} parent=1 // pred_check_branch
      %34 = sbr.rel (0) target = $region13
    $region12: #{attnwalk_loss.1} parent=1 // pred_region
      _
    $region13: #{attnwalk_loss.1} parent=1 // pred_fallthru
      _
    // Predicated region
    $region14: #{attnwalk_loss.1} parent=1 // pred_check
      _
    $region15: #{attnwalk_loss.1} parent=1 // pred_check_branch
      %36 = sbr.rel (0) target = $region17
    $region16: #{attnwalk_loss.1} parent=1 // pred_region
      _
    $region17: #{attnwalk_loss.1} parent=1 // pred_fallthru
      _
    // Predicated region
    $region18: #{attnwalk_loss.1} parent=1 // pred_check
      _
    $region19: #{attnwalk_loss.1} parent=1 // pred_check_branch
      %38 = sbr.rel (0) target = $region21
    $region20: #{attnwalk_loss.1} parent=1 // pred_region
      %39 = dma.done [#allocation5], 20480
    $region21: #{attnwalk_loss.1} parent=1 // pred_fallthru
      _
    %p41 = scmp.eq.s32.totalorder 0, 0
    // Predicated region
    $region22: #{attnwalk_loss.1} parent=1 // pred_check
      %p42 = pneg %p41
    $region23: #{attnwalk_loss.1} parent=1 // pred_check_branch
      %44 = sbr.rel (%p42) target = $region25
    $region24: #{attnwalk_loss.1} parent=1 // pred_region
      %45 = vst [vmem:[%s5] sm:$0xff] 0.0
      %46 = vst [vmem:[%s6] sm:$0xff] 0.0
    $region25: #{attnwalk_loss.1} parent=1 // pred_fallthru
      _
    %v47 = vld [vmem:[%s3] sm:$0xf]
    %v48 = vld [vmem:[%s3 + $0x4] sm:$0xf]
    %v49 = vld [vmem:[%s3 + $0x8] sm:$0xf]
    %v50 = vld [vmem:[%s3 + $0xc] sm:$0xf]
    %v51 = vld [vmem:[%s3 + $0x10] sm:$0xf]
    %v52 = vld [vmem:[%s3 + $0x14] sm:$0xf]
    %v53 = vld [vmem:[%s3 + $0x18] sm:$0xf]
    %v54 = vld [vmem:[%s3 + $0x1c] sm:$0xf]
    %v55 = vld [vmem:[%s3 + $0x20] sm:$0xf]
    %v56 = vld [vmem:[%s3 + $0x24] sm:$0xf]
    %v57 = vld [vmem:[%s3 + $0x28] sm:$0xf]
    %v58 = vld [vmem:[%s3 + $0x2c] sm:$0xf]
    %v59 = vld [vmem:[%s3 + $0x30] sm:$0xf]
    %v60 = vld [vmem:[%s3 + $0x34] sm:$0xf]
    %v61 = vld [vmem:[%s3 + $0x38] sm:$0xf]
    %v62 = vld [vmem:[%s3 + $0x3c] sm:$0xf]
    %v63 = vld [vmem:[%s3 + $0x40] sm:$0xf]
    %v64 = vld [vmem:[%s3 + $0x44] sm:$0xf]
    %v65 = vld [vmem:[%s3 + $0x48] sm:$0xf]
    %v66 = vld [vmem:[%s3 + $0x4c] sm:$0xf]
    %v67 = vld [vmem:[%s3 + $0x50] sm:$0xf]
    %v68 = vld [vmem:[%s3 + $0x54] sm:$0xf]
    %v69 = vld [vmem:[%s3 + $0x58] sm:$0xf]
    %v70 = vld [vmem:[%s3 + $0x5c] sm:$0xf]
    %v71 = vld [vmem:[%s3 + $0x60] sm:$0xf]
    %v72 = vld [vmem:[%s3 + $0x64] sm:$0xf]
    %v73 = vld [vmem:[%s3 + $0x68] sm:$0xf]
    %v74 = vld [vmem:[%s3 + $0x6c] sm:$0xf]
    %v75 = vld [vmem:[%s3 + $0x70] sm:$0xf]
    %v76 = vld [vmem:[%s3 + $0x74] sm:$0xf]
    %v77 = vld [vmem:[%s3 + $0x78] sm:$0xf]
    %v78 = vld [vmem:[%s3 + $0x7c] sm:$0xf]
    %v79 = vld [vmem:[%s4] sm:$0xff]
    %v80 = vld [vmem:[%s4 + $0x8] sm:$0xff]
    %v113 = vunpack.c.l.b16 %v47
    %v114 = vunpack.c.l.b16 %v48
    %v115 = vunpack.c.l.b16 %v49
    %v116 = vunpack.c.l.b16 %v50
    %v117 = vunpack.c.l.b16 %v51
    %v118 = vunpack.c.l.b16 %v52
    %v119 = vunpack.c.l.b16 %v53
    %v120 = vunpack.c.l.b16 %v54
    %v121 = vunpack.c.l.b16 %v55
    %v122 = vunpack.c.l.b16 %v56
    %v123 = vunpack.c.l.b16 %v57
    %v124 = vunpack.c.l.b16 %v58
    %v125 = vunpack.c.l.b16 %v59
    %v126 = vunpack.c.l.b16 %v60
    %v127 = vunpack.c.l.b16 %v61
    %v128 = vunpack.c.l.b16 %v62
    %v129 = vunpack.c.l.b16 %v63
    %v130 = vunpack.c.l.b16 %v64
    %v131 = vunpack.c.l.b16 %v65
    %v132 = vunpack.c.l.b16 %v66
    %v133 = vunpack.c.l.b16 %v67
    %v134 = vunpack.c.l.b16 %v68
    %v135 = vunpack.c.l.b16 %v69
    %v136 = vunpack.c.l.b16 %v70
    %v137 = vunpack.c.l.b16 %v71
    %v138 = vunpack.c.l.b16 %v72
    %v139 = vunpack.c.l.b16 %v73
    %v140 = vunpack.c.l.b16 %v74
    %v141 = vunpack.c.l.b16 %v75
    %v142 = vunpack.c.l.b16 %v76
    %v143 = vunpack.c.l.b16 %v77
    %v144 = vunpack.c.l.b16 %v78
    %v145 = vpack.c.b16 %v114, %v113
    %v146 = vpack.c.b16 %v116, %v115
    %v147 = vpack.c.b16 %v118, %v117
    %v148 = vpack.c.b16 %v120, %v119
    %v149 = vpack.c.b16 %v122, %v121
    %v150 = vpack.c.b16 %v124, %v123
    %v151 = vpack.c.b16 %v126, %v125
    %v152 = vpack.c.b16 %v128, %v127
    %v153 = vpack.c.b16 %v130, %v129
    %v154 = vpack.c.b16 %v132, %v131
    %v155 = vpack.c.b16 %v134, %v133
    %v156 = vpack.c.b16 %v136, %v135
    %v157 = vpack.c.b16 %v138, %v137
    %v158 = vpack.c.b16 %v140, %v139
    %v159 = vpack.c.b16 %v142, %v141
    %v160 = vpack.c.b16 %v144, %v143
    %v163 = vunpack.c.l.b16 %v79
    %v164 = vunpack.c.h.b16 %v79
    %v165 = vunpack.c.l.b16 %v80
    %v166 = vunpack.c.h.b16 %v80
    %v167 = vpack.c.b16 %v165, %v163
    %v168 = vpack.c.b16 %v166, %v164
    %vm171 = vcmask 130048
    %v173 = vsel %vm171, %v145, 0
    %v176 = vsel %vm171, %v146, 0
    %v179 = vsel %vm171, %v147, 0
    %v182 = vsel %vm171, %v148, 0
    %v185 = vsel %vm171, %v149, 0
    %v188 = vsel %vm171, %v150, 0
    %v191 = vsel %vm171, %v151, 0
    %v194 = vsel %vm171, %v152, 0
    %v197 = vsel %vm171, %v153, 0
    %v200 = vsel %vm171, %v154, 0
    %v203 = vsel %vm171, %v155, 0
    %v206 = vsel %vm171, %v156, 0
    %v209 = vsel %vm171, %v157, 0
    %v212 = vsel %vm171, %v158, 0
    %v215 = vsel %vm171, %v159, 0
    %v218 = vsel %vm171, %v160, 0
    %220 = vmatprep.subr.bf16.mxu0 %v168
    %221 = vmatpush1.bf16.msra.mxu0 %v167
    %222 = vmatprep.subr.bf16.mxu0 0
    %223 = vmatpush1.bf16.msra.mxu0 0
    %224 = vmatprep.subr.bf16.mxu0 0
    %225 = vmatpush1.bf16.msra.mxu0 0
    %226 = vmatprep.subr.bf16.mxu0 0
    %227 = vmatpush1.bf16.msra.mxu0 0
    %228 = vmatprep.subr.bf16.mxu0 0
    %229 = vmatpush1.bf16.msra.mxu0 0
    %230 = vmatprep.subr.bf16.mxu0 0
    %231 = vmatpush1.bf16.msra.mxu0 0
    %232 = vmatprep.subr.bf16.mxu0 0
    %233 = vmatpush1.bf16.msra.mxu0 0
    %234 = vmatprep.subr.bf16.mxu0 0
    %235 = vmatpush1.bf16.msra.mxu0 0
    %236 = vmatprep.subr.bf16.mxu0 0
    %237 = vmatpush1.bf16.msra.mxu0 0
    %238 = vmatprep.subr.bf16.mxu0 0
    %239 = vmatpush1.bf16.msra.mxu0 0
    %240 = vmatprep.subr.bf16.mxu0 0
    %241 = vmatpush1.bf16.msra.mxu0 0
    %242 = vmatprep.subr.bf16.mxu0 0
    %243 = vmatpush1.bf16.msra.mxu0 0
    %244 = vmatprep.subr.bf16.mxu0 0
    %245 = vmatpush1.bf16.msra.mxu0 0
    %246 = vmatprep.subr.bf16.mxu0 0
    %247 = vmatpush1.bf16.msra.mxu0 0
    %248 = vmatprep.subr.bf16.mxu0 0
    %249 = vmatpush1.bf16.msra.mxu0 0
    %250 = vmatprep.subr.bf16.mxu0 0
    %251 = vmatpush1.bf16.msra.mxu0 0
    %252 = vmatprep.mubr.bf16.mxu0 0
    %253 = vmatmul.mubr.bf16.gmra.mrb[0].mxu0 %v173
    %v254 = vpop.f32.mrb[0].mxu0
    %v255 = vadd.f32 0.0, %v254
    %v256 = vpop.f32.mrb[0].mxu0
    %v257 = vadd.f32 0.0, %v256
    %v258 = vpop.f32.mrb[0].mxu0
    %v259 = vadd.f32 0.0, %v258
    %v260 = vpop.f32.mrb[0].mxu0
    %v261 = vadd.f32 0.0, %v260
    %262 = vmatprep.mubr.bf16.mxu0 0
    %263 = vmatmul.mubr.bf16.gmra.mrb[0].mxu0 %v176
    %v264 = vpop.f32.mrb[0].mxu0
    %v265 = vadd.f32 0.0, %v264
    %v266 = vpop.f32.mrb[0].mxu0
    %v267 = vadd.f32 0.0, %v266
    %v268 = vpop.f32.mrb[0].mxu0
    %v269 = vadd.f32 0.0, %v268
    %v270 = vpop.f32.mrb[0].mxu0
    %v271 = vadd.f32 0.0, %v270
    %272 = vmatprep.mubr.bf16.mxu0 0
    %273 = vmatmul.mubr.bf16.gmra.mrb[0].mxu0 %v179
    %v274 = vpop.f32.mrb[0].mxu0
    %v275 = vadd.f32 0.0, %v274
    %v276 = vpop.f32.mrb[0].mxu0
    %v277 = vadd.f32 0.0, %v276
    %v278 = vpop.f32.mrb[0].mxu0
    %v279 = vadd.f32 0.0, %v278
    %v280 = vpop.f32.mrb[0].mxu0
    %v281 = vadd.f32 0.0, %v280
    %282 = vmatprep.mubr.bf16.mxu0 0
    %283 = vmatmul.mubr.bf16.gmra.mrb[0].mxu0 %v182
    %v284 = vpop.f32.mrb[0].mxu0
    %v285 = vadd.f32 0.0, %v284
    %v286 = vpop.f32.mrb[0].mxu0
    %v287 = vadd.f32 0.0, %v286
    %v288 = vpop.f32.mrb[0].mxu0
    %v289 = vadd.f32 0.0, %v288
    %v290 = vpop.f32.mrb[0].mxu0
    %v291 = vadd.f32 0.0, %v290
    %292 = vmatprep.mubr.bf16.mxu0 0
    %293 = vmatmul.mubr.bf16.gmra.mrb[0].mxu0 %v185
    %v294 = vpop.f32.mrb[0].mxu0
    %v295 = vadd.f32 0.0, %v294
    %v296 = vpop.f32.mrb[0].mxu0
    %v297 = vadd.f32 0.0, %v296
    %v298 = vpop.f32.mrb[0].mxu0
    %v299 = vadd.f32 0.0, %v298
    %v300 = vpop.f32.mrb[0].mxu0
    %v301 = vadd.f32 0.0, %v300
    %302 = vmatprep.mubr.bf16.mxu0 0
    %303 = vmatmul.mubr.bf16.gmra.mrb[0].mxu0 %v188
    %v304 = vpop.f32.mrb[0].mxu0
    %v305 = vadd.f32 0.0, %v304
    %v306 = vpop.f32.mrb[0].mxu0
    %v307 = vadd.f32 0.0, %v306
    %v308 = vpop.f32.mrb[0].mxu0
    %v309 = vadd.f32 0.0, %v308
    %v310 = vpop.f32.mrb[0].mxu0
    %v311 = vadd.f32 0.0, %v310
    %312 = vmatprep.mubr.bf16.mxu0 0
    %313 = vmatmul.mubr.bf16.gmra.mrb[0].mxu0 %v191
    %v314 = vpop.f32.mrb[0].mxu0
    %v315 = vadd.f32 0.0, %v314
    %v316 = vpop.f32.mrb[0].mxu0
    %v317 = vadd.f32 0.0, %v316
    %v318 = vpop.f32.mrb[0].mxu0
    %v319 = vadd.f32 0.0, %v318
    %v320 = vpop.f32.mrb[0].mxu0
    %v321 = vadd.f32 0.0, %v320
    %322 = vmatprep.mubr.bf16.mxu0 0
    %323 = vmatmul.mubr.bf16.gmra.mrb[0].mxu0 %v194
    %v324 = vpop.f32.mrb[0].mxu0
    %v325 = vadd.f32 0.0, %v324
    %v326 = vpop.f32.mrb[0].mxu0
    %v327 = vadd.f32 0.0, %v326
    %v328 = vpop.f32.mrb[0].mxu0
    %v329 = vadd.f32 0.0, %v328
    %v330 = vpop.f32.mrb[0].mxu0
    %v331 = vadd.f32 0.0, %v330
    %332 = vmatprep.mubr.bf16.mxu0 0
    %333 = vmatmul.mubr.bf16.gmra.mrb[0].mxu0 %v197
    %v334 = vpop.f32.mrb[0].mxu0
    %v335 = vadd.f32 0.0, %v334
    %v336 = vpop.f32.mrb[0].mxu0
    %v337 = vadd.f32 0.0, %v336
    %v338 = vpop.f32.mrb[0].mxu0
    %v339 = vadd.f32 0.0, %v338
    %v340 = vpop.f32.mrb[0].mxu0
    %v341 = vadd.f32 0.0, %v340
    %342 = vmatprep.mubr.bf16.mxu0 0
    %343 = vmatmul.mubr.bf16.gmra.mrb[0].mxu0 %v200
    %v344 = vpop.f32.mrb[0].mxu0
    %v345 = vadd.f32 0.0, %v344
    %v346 = vpop.f32.mrb[0].mxu0
    %v347 = vadd.f32 0.0, %v346
    %v348 = vpop.f32.mrb[0].mxu0
    %v349 = vadd.f32 0.0, %v348
    %v350 = vpop.f32.mrb[0].mxu0
    %v351 = vadd.f32 0.0, %v350
    %352 = vmatprep.mubr.bf16.mxu0 0
    %353 = vmatmul.mubr.bf16.gmra.mrb[0].mxu0 %v203
    %v354 = vpop.f32.mrb[0].mxu0
    %v355 = vadd.f32 0.0, %v354
    %v356 = vpop.f32.mrb[0].mxu0
    %v357 = vadd.f32 0.0, %v356
    %v358 = vpop.f32.mrb[0].mxu0
    %v359 = vadd.f32 0.0, %v358
    %v360 = vpop.f32.mrb[0].mxu0
    %v361 = vadd.f32 0.0, %v360
    %362 = vmatprep.mubr.bf16.mxu0 0
    %363 = vmatmul.mubr.bf16.gmra.mrb[0].mxu0 %v206
    %v364 = vpop.f32.mrb[0].mxu0
    %v365 = vadd.f32 0.0, %v364
    %v366 = vpop.f32.mrb[0].mxu0
    %v367 = vadd.f32 0.0, %v366
    %v368 = vpop.f32.mrb[0].mxu0
    %v369 = vadd.f32 0.0, %v368
    %v370 = vpop.f32.mrb[0].mxu0
    %v371 = vadd.f32 0.0, %v370
    %372 = vmatprep.mubr.bf16.mxu0 0
    %373 = vmatmul.mubr.bf16.gmra.mrb[0].mxu0 %v209
    %v374 = vpop.f32.mrb[0].mxu0
    %v375 = vadd.f32 0.0, %v374
    %v376 = vpop.f32.mrb[0].mxu0
    %v377 = vadd.f32 0.0, %v376
    %v378 = vpop.f32.mrb[0].mxu0
    %v379 = vadd.f32 0.0, %v378
    %v380 = vpop.f32.mrb[0].mxu0
    %v381 = vadd.f32 0.0, %v380
    %382 = vmatprep.mubr.bf16.mxu0 0
    %383 = vmatmul.mubr.bf16.gmra.mrb[0].mxu0 %v212
    %v384 = vpop.f32.mrb[0].mxu0
    %v385 = vadd.f32 0.0, %v384
    %v386 = vpop.f32.mrb[0].mxu0
    %v387 = vadd.f32 0.0, %v386
    %v388 = vpop.f32.mrb[0].mxu0
    %v389 = vadd.f32 0.0, %v388
    %v390 = vpop.f32.mrb[0].mxu0
    %v391 = vadd.f32 0.0, %v390
    %392 = vmatprep.mubr.bf16.mxu0 0
    %393 = vmatmul.mubr.bf16.gmra.mrb[0].mxu0 %v215
    %v394 = vpop.f32.mrb[0].mxu0
    %v395 = vadd.f32 0.0, %v394
    %v396 = vpop.f32.mrb[0].mxu0
    %v397 = vadd.f32 0.0, %v396
    %v398 = vpop.f32.mrb[0].mxu0
    %v399 = vadd.f32 0.0, %v398
    %v400 = vpop.f32.mrb[0].mxu0
    %v401 = vadd.f32 0.0, %v400
    %402 = vmatprep.mubr.bf16.mxu0 0
    %403 = vmatmul.mubr.bf16.gmra.mrb[0].mxu0 %v218
    %v404 = vpop.f32.mrb[0].mxu0
    %v405 = vadd.f32 0.0, %v404
    %v406 = vpop.f32.mrb[0].mxu0
    %v407 = vadd.f32 0.0, %v406
    %v408 = vpop.f32.mrb[0].mxu0
    %v409 = vadd.f32 0.0, %v408
    %v410 = vpop.f32.mrb[0].mxu0
    %v411 = vadd.f32 0.0, %v410
    %412 = vdwg.mxu0
    %v413 = vmax.f32 %v255, 0.0
    %v414 = vmax.f32 %v257, 0.0
    %v415 = vmax.f32 %v259, 0.0
    %v416 = vmax.f32 %v261, 0.0
    %v417 = vmax.f32 %v265, 0.0
    %v418 = vmax.f32 %v267, 0.0
    %v419 = vmax.f32 %v269, 0.0
    %v420 = vmax.f32 %v271, 0.0
    %v421 = vmax.f32 %v275, 0.0
    %v422 = vmax.f32 %v277, 0.0
    %v423 = vmax.f32 %v279, 0.0
    %v424 = vmax.f32 %v281, 0.0
    %v425 = vmax.f32 %v285, 0.0
    %v426 = vmax.f32 %v287, 0.0
    %v427 = vmax.f32 %v289, 0.0
    %v428 = vmax.f32 %v291, 0.0
    %v429 = vmax.f32 %v295, 0.0
    %v430 = vmax.f32 %v297, 0.0
    %v431 = vmax.f32 %v299, 0.0
    %v432 = vmax.f32 %v301, 0.0
    %v433 = vmax.f32 %v305, 0.0
    %v434 = vmax.f32 %v307, 0.0
    %v435 = vmax.f32 %v309, 0.0
    %v436 = vmax.f32 %v311, 0.0
    %v437 = vmax.f32 %v315, 0.0
    %v438 = vmax.f32 %v317, 0.0
    %v439 = vmax.f32 %v319, 0.0
    %v440 = vmax.f32 %v321, 0.0
    %v441 = vmax.f32 %v325, 0.0
    %v442 = vmax.f32 %v327, 0.0
    %v443 = vmax.f32 %v329, 0.0
    %v444 = vmax.f32 %v331, 0.0
    %v445 = vmax.f32 %v335, 0.0
    %v446 = vmax.f32 %v337, 0.0
    %v447 = vmax.f32 %v339, 0.0
    %v448 = vmax.f32 %v341, 0.0
    %v449 = vmax.f32 %v345, 0.0
    %v450 = vmax.f32 %v347, 0.0
    %v451 = vmax.f32 %v349, 0.0
    %v452 = vmax.f32 %v351, 0.0
    %v453 = vmax.f32 %v355, 0.0
    %v454 = vmax.f32 %v357, 0.0
    %v455 = vmax.f32 %v359, 0.0
    %v456 = vmax.f32 %v361, 0.0
    %v457 = vmax.f32 %v365, 0.0
    %v458 = vmax.f32 %v367, 0.0
    %v459 = vmax.f32 %v369, 0.0
    %v460 = vmax.f32 %v371, 0.0
    %v461 = vmax.f32 %v375, 0.0
    %v462 = vmax.f32 %v377, 0.0
    %v463 = vmax.f32 %v379, 0.0
    %v464 = vmax.f32 %v381, 0.0
    %v465 = vmax.f32 %v385, 0.0
    %v466 = vmax.f32 %v387, 0.0
    %v467 = vmax.f32 %v389, 0.0
    %v468 = vmax.f32 %v391, 0.0
    %v469 = vmax.f32 %v395, 0.0
    %v470 = vmax.f32 %v397, 0.0
    %v471 = vmax.f32 %v399, 0.0
    %v472 = vmax.f32 %v401, 0.0
    %v473 = vmax.f32 %v405, 0.0
    %v474 = vmax.f32 %v407, 0.0
    %v475 = vmax.f32 %v409, 0.0
    %v476 = vmax.f32 %v411, 0.0
    %v477 = vand.u32 2147483647, %v255
    %v478 = vand.u32 2147483647, %v257
    %v479 = vand.u32 2147483647, %v259
    %v480 = vand.u32 2147483647, %v261
    %v481 = vand.u32 2147483647, %v265
    %v482 = vand.u32 2147483647, %v267
    %v483 = vand.u32 2147483647, %v269
    %v484 = vand.u32 2147483647, %v271
    %v485 = vand.u32 2147483647, %v275
    %v486 = vand.u32 2147483647, %v277
    %v487 = vand.u32 2147483647, %v279
    %v488 = vand.u32 2147483647, %v281
    %v489 = vand.u32 2147483647, %v285
    %v490 = vand.u32 2147483647, %v287
    %v491 = vand.u32 2147483647, %v289
    %v492 = vand.u32 2147483647, %v291
    %v493 = vand.u32 2147483647, %v295
    %v494 = vand.u32 2147483647, %v297
    %v495 = vand.u32 2147483647, %v299
    %v496 = vand.u32 2147483647, %v301
    %v497 = vand.u32 2147483647, %v305
    %v498 = vand.u32 2147483647, %v307
    %v499 = vand.u32 2147483647, %v309
    %v500 = vand.u32 2147483647, %v311
    %v501 = vand.u32 2147483647, %v315
    %v502 = vand.u32 2147483647, %v317
    %v503 = vand.u32 2147483647, %v319
    %v504 = vand.u32 2147483647, %v321
    %v505 = vand.u32 2147483647, %v325
    %v506 = vand.u32 2147483647, %v327
    %v507 = vand.u32 2147483647, %v329
    %v508 = vand.u32 2147483647, %v331
    %v509 = vand.u32 2147483647, %v335
    %v510 = vand.u32 2147483647, %v337
    %v511 = vand.u32 2147483647, %v339
    %v512 = vand.u32 2147483647, %v341
    %v513 = vand.u32 2147483647, %v345
    %v514 = vand.u32 2147483647, %v347
    %v515 = vand.u32 2147483647, %v349
    %v516 = vand.u32 2147483647, %v351
    %v517 = vand.u32 2147483647, %v355
    %v518 = vand.u32 2147483647, %v357
    %v519 = vand.u32 2147483647, %v359
    %v520 = vand.u32 2147483647, %v361
    %v521 = vand.u32 2147483647, %v365
    %v522 = vand.u32 2147483647, %v367
    %v523 = vand.u32 2147483647, %v369
    %v524 = vand.u32 2147483647, %v371
    %v525 = vand.u32 2147483647, %v375
    %v526 = vand.u32 2147483647, %v377
    %v527 = vand.u32 2147483647, %v379
    %v528 = vand.u32 2147483647, %v381
    %v529 = vand.u32 2147483647, %v385
    %v530 = vand.u32 2147483647, %v387
    %v531 = vand.u32 2147483647, %v389
    %v532 = vand.u32 2147483647, %v391
    %v533 = vand.u32 2147483647, %v395
    %v534 = vand.u32 2147483647, %v397
    %v535 = vand.u32 2147483647, %v399
    %v536 = vand.u32 2147483647, %v401
    %v537 = vand.u32 2147483647, %v405
    %v538 = vand.u32 2147483647, %v407
    %v539 = vand.u32 2147483647, %v409
    %v540 = vand.u32 2147483647, %v411
    %v541 = vsub.f32 0.0, %v477
    %v542 = vsub.f32 0.0, %v478
    %v543 = vsub.f32 0.0, %v479
    %v544 = vsub.f32 0.0, %v480
    %v545 = vsub.f32 0.0, %v481
    %v546 = vsub.f32 0.0, %v482
    %v547 = vsub.f32 0.0, %v483
    %v548 = vsub.f32 0.0, %v484
    %v549 = vsub.f32 0.0, %v485
    %v550 = vsub.f32 0.0, %v486
    %v551 = vsub.f32 0.0, %v487
    %v552 = vsub.f32 0.0, %v488
    %v553 = vsub.f32 0.0, %v489
    %v554 = vsub.f32 0.0, %v490
    %v555 = vsub.f32 0.0, %v491
    %v556 = vsub.f32 0.0, %v492
    %v557 = vsub.f32 0.0, %v493
    %v558 = vsub.f32 0.0, %v494
    %v559 = vsub.f32 0.0, %v495
    %v560 = vsub.f32 0.0, %v496
    %v561 = vsub.f32 0.0, %v497
    %v562 = vsub.f32 0.0, %v498
    %v563 = vsub.f32 0.0, %v499
    %v564 = vsub.f32 0.0, %v500
    %v565 = vsub.f32 0.0, %v501
    %v566 = vsub.f32 0.0, %v502
    %v567 = vsub.f32 0.0, %v503
    %v568 = vsub.f32 0.0, %v504
    %v569 = vsub.f32 0.0, %v505
    %v570 = vsub.f32 0.0, %v506
    %v571 = vsub.f32 0.0, %v507
    %v572 = vsub.f32 0.0, %v508
    %v573 = vsub.f32 0.0, %v509
    %v574 = vsub.f32 0.0, %v510
    %v575 = vsub.f32 0.0, %v511
    %v576 = vsub.f32 0.0, %v512
    %v577 = vsub.f32 0.0, %v513
    %v578 = vsub.f32 0.0, %v514
    %v579 = vsub.f32 0.0, %v515
    %v580 = vsub.f32 0.0, %v516
    %v581 = vsub.f32 0.0, %v517
    %v582 = vsub.f32 0.0, %v518
    %v583 = vsub.f32 0.0, %v519
    %v584 = vsub.f32 0.0, %v520
    %v585 = vsub.f32 0.0, %v521
    %v586 = vsub.f32 0.0, %v522
    %v587 = vsub.f32 0.0, %v523
    %v588 = vsub.f32 0.0, %v524
    %v589 = vsub.f32 0.0, %v525
    %v590 = vsub.f32 0.0, %v526
    %v591 = vsub.f32 0.0, %v527
    %v592 = vsub.f32 0.0, %v528
    %v593 = vsub.f32 0.0, %v529
    %v594 = vsub.f32 0.0, %v530
    %v595 = vsub.f32 0.0, %v531
    %v596 = vsub.f32 0.0, %v532
    %v597 = vsub.f32 0.0, %v533
    %v598 = vsub.f32 0.0, %v534
    %v599 = vsub.f32 0.0, %v535
    %v600 = vsub.f32 0.0, %v536
    %v601 = vsub.f32 0.0, %v537
    %v602 = vsub.f32 0.0, %v538
    %v603 = vsub.f32 0.0, %v539
    %v604 = vsub.f32 0.0, %v540
    %v605 = vmul.f32 %v541, 1.442695
    %v606 = vpow.pop %v605
    %v607 = vmul.f32 %v542, 1.442695
    %v608 = vpow.pop %v607
    %v609 = vmul.f32 %v543, 1.442695
    %v610 = vpow.pop %v609
    %v611 = vmul.f32 %v544, 1.442695
    %v612 = vpow.pop %v611
    %v613 = vmul.f32 %v545, 1.442695
    %v614 = vpow.pop %v613
    %v615 = vmul.f32 %v546, 1.442695
    %v616 = vpow.pop %v615
    %v617 = vmul.f32 %v547, 1.442695
    %v618 = vpow.pop %v617
    %v619 = vmul.f32 %v548, 1.442695
    %v620 = vpow.pop %v619
    %v621 = vmul.f32 %v549, 1.442695
    %v622 = vpow.pop %v621
    %v623 = vmul.f32 %v550, 1.442695
    %v624 = vpow.pop %v623
    %v625 = vmul.f32 %v551, 1.442695
    %v626 = vpow.pop %v625
    %v627 = vmul.f32 %v552, 1.442695
    %v628 = vpow.pop %v627
    %v629 = vmul.f32 %v553, 1.442695
    %v630 = vpow.pop %v629
    %v631 = vmul.f32 %v554, 1.442695
    %v632 = vpow.pop %v631
    %v633 = vmul.f32 %v555, 1.442695
    %v634 = vpow.pop %v633
    %v635 = vmul.f32 %v556, 1.442695
    %v636 = vpow.pop %v635
    %v637 = vmul.f32 %v557, 1.442695
    %v638 = vpow.pop %v637
    %v639 = vmul.f32 %v558, 1.442695
    %v640 = vpow.pop %v639
    %v641 = vmul.f32 %v559, 1.442695
    %v642 = vpow.pop %v641
    %v643 = vmul.f32 %v560, 1.442695
    %v644 = vpow.pop %v643
    %v645 = vmul.f32 %v561, 1.442695
    %v646 = vpow.pop %v645
    %v647 = vmul.f32 %v562, 1.442695
    %v648 = vpow.pop %v647
    %v649 = vmul.f32 %v563, 1.442695
    %v650 = vpow.pop %v649
    %v651 = vmul.f32 %v564, 1.442695
    %v652 = vpow.pop %v651
    %v653 = vmul.f32 %v565, 1.442695
    %v654 = vpow.pop %v653
    %v655 = vmul.f32 %v566, 1.442695
    %v656 = vpow.pop %v655
    %v657 = vmul.f32 %v567, 1.442695
    %v658 = vpow.pop %v657
    %v659 = vmul.f32 %v568, 1.442695
    %v660 = vpow.pop %v659
    %v661 = vmul.f32 %v569, 1.442695
    %v662 = vpow.pop %v661
    %v663 = vmul.f32 %v570, 1.442695
    %v664 = vpow.pop %v663
    %v665 = vmul.f32 %v571, 1.442695
    %v666 = vpow.pop %v665
    %v667 = vmul.f32 %v572, 1.442695
    %v668 = vpow.pop %v667
    %v669 = vmul.f32 %v573, 1.442695
    %v670 = vpow.pop %v669
    %v671 = vmul.f32 %v574, 1.442695
    %v672 = vpow.pop %v671
    %v673 = vmul.f32 %v575, 1.442695
    %v674 = vpow.pop %v673
    %v675 = vmul.f32 %v576, 1.442695
    %v676 = vpow.pop %v675
    %v677 = vmul.f32 %v577, 1.442695
    %v678 = vpow.pop %v677
    %v679 = vmul.f32 %v578, 1.442695
    %v680 = vpow.pop %v679
    %v681 = vmul.f32 %v579, 1.442695
    %v682 = vpow.pop %v681
    %v683 = vmul.f32 %v580, 1.442695
    %v684 = vpow.pop %v683
    %v685 = vmul.f32 %v581, 1.442695
    %v686 = vpow.pop %v685
    %v687 = vmul.f32 %v582, 1.442695
    %v688 = vpow.pop %v687
    %v689 = vmul.f32 %v583, 1.442695
    %v690 = vpow.pop %v689
    %v691 = vmul.f32 %v584, 1.442695
    %v692 = vpow.pop %v691
    %v693 = vmul.f32 %v585, 1.442695
    %v694 = vpow.pop %v693
    %v695 = vmul.f32 %v586, 1.442695
    %v696 = vpow.pop %v695
    %v697 = vmul.f32 %v587, 1.442695
    %v698 = vpow.pop %v697
    %v699 = vmul.f32 %v588, 1.442695
    %v700 = vpow.pop %v699
    %v701 = vmul.f32 %v589, 1.442695
    %v702 = vpow.pop %v701
    %v703 = vmul.f32 %v590, 1.442695
    %v704 = vpow.pop %v703
    %v705 = vmul.f32 %v591, 1.442695
    %v706 = vpow.pop %v705
    %v707 = vmul.f32 %v592, 1.442695
    %v708 = vpow.pop %v707
    %v709 = vmul.f32 %v593, 1.442695
    %v710 = vpow.pop %v709
    %v711 = vmul.f32 %v594, 1.442695
    %v712 = vpow.pop %v711
    %v713 = vmul.f32 %v595, 1.442695
    %v714 = vpow.pop %v713
    %v715 = vmul.f32 %v596, 1.442695
    %v716 = vpow.pop %v715
    %v717 = vmul.f32 %v597, 1.442695
    %v718 = vpow.pop %v717
    %v719 = vmul.f32 %v598, 1.442695
    %v720 = vpow.pop %v719
    %v721 = vmul.f32 %v599, 1.442695
    %v722 = vpow.pop %v721
    %v723 = vmul.f32 %v600, 1.442695
    %v724 = vpow.pop %v723
    %v725 = vmul.f32 %v601, 1.442695
    %v726 = vpow.pop %v725
    %v727 = vmul.f32 %v602, 1.442695
    %v728 = vpow.pop %v727
    %v729 = vmul.f32 %v603, 1.442695
    %v730 = vpow.pop %v729
    %v731 = vmul.f32 %v604, 1.442695
    %v732 = vpow.pop %v731
    %v733 = vadd.f32 %v606, 1.0
    %v734 = vadd.f32 %v608, 1.0
    %v735 = vadd.f32 %v610, 1.0
    %v736 = vadd.f32 %v612, 1.0
    %v737 = vadd.f32 %v614, 1.0
    %v738 = vadd.f32 %v616, 1.0
    %v739 = vadd.f32 %v618, 1.0
    %v740 = vadd.f32 %v620, 1.0
    %v741 = vadd.f32 %v622, 1.0
    %v742 = vadd.f32 %v624, 1.0
    %v743 = vadd.f32 %v626, 1.0
    %v744 = vadd.f32 %v628, 1.0
    %v745 = vadd.f32 %v630, 1.0
    %v746 = vadd.f32 %v632, 1.0
    %v747 = vadd.f32 %v634, 1.0
    %v748 = vadd.f32 %v636, 1.0
    %v749 = vadd.f32 %v638, 1.0
    %v750 = vadd.f32 %v640, 1.0
    %v751 = vadd.f32 %v642, 1.0
    %v752 = vadd.f32 %v644, 1.0
    %v753 = vadd.f32 %v646, 1.0
    %v754 = vadd.f32 %v648, 1.0
    %v755 = vadd.f32 %v650, 1.0
    %v756 = vadd.f32 %v652, 1.0
    %v757 = vadd.f32 %v654, 1.0
    %v758 = vadd.f32 %v656, 1.0
    %v759 = vadd.f32 %v658, 1.0
    %v760 = vadd.f32 %v660, 1.0
    %v761 = vadd.f32 %v662, 1.0
    %v762 = vadd.f32 %v664, 1.0
    %v763 = vadd.f32 %v666, 1.0
    %v764 = vadd.f32 %v668, 1.0
    %v765 = vadd.f32 %v670, 1.0
    %v766 = vadd.f32 %v672, 1.0
    %v767 = vadd.f32 %v674, 1.0
    %v768 = vadd.f32 %v676, 1.0
    %v769 = vadd.f32 %v678, 1.0
    %v770 = vadd.f32 %v680, 1.0
    %v771 = vadd.f32 %v682, 1.0
    %v772 = vadd.f32 %v684, 1.0
    %v773 = vadd.f32 %v686, 1.0
    %v774 = vadd.f32 %v688, 1.0
    %v775 = vadd.f32 %v690, 1.0
    %v776 = vadd.f32 %v692, 1.0
    %v777 = vadd.f32 %v694, 1.0
    %v778 = vadd.f32 %v696, 1.0
    %v779 = vadd.f32 %v698, 1.0
    %v780 = vadd.f32 %v700, 1.0
    %v781 = vadd.f32 %v702, 1.0
    %v782 = vadd.f32 %v704, 1.0
    %v783 = vadd.f32 %v706, 1.0
    %v784 = vadd.f32 %v708, 1.0
    %v785 = vadd.f32 %v710, 1.0
    %v786 = vadd.f32 %v712, 1.0
    %v787 = vadd.f32 %v714, 1.0
    %v788 = vadd.f32 %v716, 1.0
    %v789 = vadd.f32 %v718, 1.0
    %v790 = vadd.f32 %v720, 1.0
    %v791 = vadd.f32 %v722, 1.0
    %v792 = vadd.f32 %v724, 1.0
    %v793 = vadd.f32 %v726, 1.0
    %v794 = vadd.f32 %v728, 1.0
    %v795 = vadd.f32 %v730, 1.0
    %v796 = vadd.f32 %v732, 1.0
    %v797 = vlog2.pop %v733
    %v798 = vmul.f32 %v797, 0.6931472
    %v799 = vlog2.pop %v734
    %v800 = vmul.f32 %v799, 0.6931472
    %v801 = vlog2.pop %v735
    %v802 = vmul.f32 %v801, 0.6931472
    %v803 = vlog2.pop %v736
    %v804 = vmul.f32 %v803, 0.6931472
    %v805 = vlog2.pop %v737
    %v806 = vmul.f32 %v805, 0.6931472
    %v807 = vlog2.pop %v738
    %v808 = vmul.f32 %v807, 0.6931472
    %v809 = vlog2.pop %v739
    %v810 = vmul.f32 %v809, 0.6931472
    %v811 = vlog2.pop %v740
    %v812 = vmul.f32 %v811, 0.6931472
    %v813 = vlog2.pop %v741
    %v814 = vmul.f32 %v813, 0.6931472
    %v815 = vlog2.pop %v742
    %v816 = vmul.f32 %v815, 0.6931472
    %v817 = vlog2.pop %v743
    %v818 = vmul.f32 %v817, 0.6931472
    %v819 = vlog2.pop %v744
    %v820 = vmul.f32 %v819, 0.6931472
    %v821 = vlog2.pop %v745
    %v822 = vmul.f32 %v821, 0.6931472
    %v823 = vlog2.pop %v746
    %v824 = vmul.f32 %v823, 0.6931472
    %v825 = vlog2.pop %v747
    %v826 = vmul.f32 %v825, 0.6931472
    %v827 = vlog2.pop %v748
    %v828 = vmul.f32 %v827, 0.6931472
    %v829 = vlog2.pop %v749
    %v830 = vmul.f32 %v829, 0.6931472
    %v831 = vlog2.pop %v750
    %v832 = vmul.f32 %v831, 0.6931472
    %v833 = vlog2.pop %v751
    %v834 = vmul.f32 %v833, 0.6931472
    %v835 = vlog2.pop %v752
    %v836 = vmul.f32 %v835, 0.6931472
    %v837 = vlog2.pop %v753
    %v838 = vmul.f32 %v837, 0.6931472
    %v839 = vlog2.pop %v754
    %v840 = vmul.f32 %v839, 0.6931472
    %v841 = vlog2.pop %v755
    %v842 = vmul.f32 %v841, 0.6931472
    %v843 = vlog2.pop %v756
    %v844 = vmul.f32 %v843, 0.6931472
    %v845 = vlog2.pop %v757
    %v846 = vmul.f32 %v845, 0.6931472
    %v847 = vlog2.pop %v758
    %v848 = vmul.f32 %v847, 0.6931472
    %v849 = vlog2.pop %v759
    %v850 = vmul.f32 %v849, 0.6931472
    %v851 = vlog2.pop %v760
    %v852 = vmul.f32 %v851, 0.6931472
    %v853 = vlog2.pop %v761
    %v854 = vmul.f32 %v853, 0.6931472
    %v855 = vlog2.pop %v762
    %v856 = vmul.f32 %v855, 0.6931472
    %v857 = vlog2.pop %v763
    %v858 = vmul.f32 %v857, 0.6931472
    %v859 = vlog2.pop %v764
    %v860 = vmul.f32 %v859, 0.6931472
    %v861 = vlog2.pop %v765
    %v862 = vmul.f32 %v861, 0.6931472
    %v863 = vlog2.pop %v766
    %v864 = vmul.f32 %v863, 0.6931472
    %v865 = vlog2.pop %v767
    %v866 = vmul.f32 %v865, 0.6931472
    %v867 = vlog2.pop %v768
    %v868 = vmul.f32 %v867, 0.6931472
    %v869 = vlog2.pop %v769
    %v870 = vmul.f32 %v869, 0.6931472
    %v871 = vlog2.pop %v770
    %v872 = vmul.f32 %v871, 0.6931472
    %v873 = vlog2.pop %v771
    %v874 = vmul.f32 %v873, 0.6931472
    %v875 = vlog2.pop %v772
    %v876 = vmul.f32 %v875, 0.6931472
    %v877 = vlog2.pop %v773
    %v878 = vmul.f32 %v877, 0.6931472
    %v879 = vlog2.pop %v774
    %v880 = vmul.f32 %v879, 0.6931472
    %v881 = vlog2.pop %v775
    %v882 = vmul.f32 %v881, 0.6931472
    %v883 = vlog2.pop %v776
    %v884 = vmul.f32 %v883, 0.6931472
    %v885 = vlog2.pop %v777
    %v886 = vmul.f32 %v885, 0.6931472
    %v887 = vlog2.pop %v778
    %v888 = vmul.f32 %v887, 0.6931472
    %v889 = vlog2.pop %v779
    %v890 = vmul.f32 %v889, 0.6931472
    %v891 = vlog2.pop %v780
    %v892 = vmul.f32 %v891, 0.6931472
    %v893 = vlog2.pop %v781
    %v894 = vmul.f32 %v893, 0.6931472
    %v895 = vlog2.pop %v782
    %v896 = vmul.f32 %v895, 0.6931472
    %v897 = vlog2.pop %v783
    %v898 = vmul.f32 %v897, 0.6931472
    %v899 = vlog2.pop %v784
    %v900 = vmul.f32 %v899, 0.6931472
    %v901 = vlog2.pop %v785
    %v902 = vmul.f32 %v901, 0.6931472
    %v903 = vlog2.pop %v786
    %v904 = vmul.f32 %v903, 0.6931472
    %v905 = vlog2.pop %v787
    %v906 = vmul.f32 %v905, 0.6931472
    %v907 = vlog2.pop %v788
    %v908 = vmul.f32 %v907, 0.6931472
    %v909 = vlog2.pop %v789
    %v910 = vmul.f32 %v909, 0.6931472
    %v911 = vlog2.pop %v790
    %v912 = vmul.f32 %v911, 0.6931472
    %v913 = vlog2.pop %v791
    %v914 = vmul.f32 %v913, 0.6931472
    %v915 = vlog2.pop %v792
    %v916 = vmul.f32 %v915, 0.6931472
    %v917 = vlog2.pop %v793
    %v918 = vmul.f32 %v917, 0.6931472
    %v919 = vlog2.pop %v794
    %v920 = vmul.f32 %v919, 0.6931472
    %v921 = vlog2.pop %v795
    %v922 = vmul.f32 %v921, 0.6931472
    %v923 = vlog2.pop %v796
    %v924 = vmul.f32 %v923, 0.6931472
    %v925 = vadd.f32 %v413, %v798
    %v926 = vadd.f32 %v414, %v800
    %v927 = vadd.f32 %v415, %v802
    %v928 = vadd.f32 %v416, %v804
    %v929 = vadd.f32 %v417, %v806
    %v930 = vadd.f32 %v418, %v808
    %v931 = vadd.f32 %v419, %v810
    %v932 = vadd.f32 %v420, %v812
    %v933 = vadd.f32 %v421, %v814
    %v934 = vadd.f32 %v422, %v816
    %v935 = vadd.f32 %v423, %v818
    %v936 = vadd.f32 %v424, %v820
    %v937 = vadd.f32 %v425, %v822
    %v938 = vadd.f32 %v426, %v824
    %v939 = vadd.f32 %v427, %v826
    %v940 = vadd.f32 %v428, %v828
    %v941 = vadd.f32 %v429, %v830
    %v942 = vadd.f32 %v430, %v832
    %v943 = vadd.f32 %v431, %v834
    %v944 = vadd.f32 %v432, %v836
    %v945 = vadd.f32 %v433, %v838
    %v946 = vadd.f32 %v434, %v840
    %v947 = vadd.f32 %v435, %v842
    %v948 = vadd.f32 %v436, %v844
    %v949 = vadd.f32 %v437, %v846
    %v950 = vadd.f32 %v438, %v848
    %v951 = vadd.f32 %v439, %v850
    %v952 = vadd.f32 %v440, %v852
    %v953 = vadd.f32 %v441, %v854
    %v954 = vadd.f32 %v442, %v856
    %v955 = vadd.f32 %v443, %v858
    %v956 = vadd.f32 %v444, %v860
    %v957 = vadd.f32 %v445, %v862
    %v958 = vadd.f32 %v446, %v864
    %v959 = vadd.f32 %v447, %v866
    %v960 = vadd.f32 %v448, %v868
    %v961 = vadd.f32 %v449, %v870
    %v962 = vadd.f32 %v450, %v872
    %v963 = vadd.f32 %v451, %v874
    %v964 = vadd.f32 %v452, %v876
    %v965 = vadd.f32 %v453, %v878
    %v966 = vadd.f32 %v454, %v880
    %v967 = vadd.f32 %v455, %v882
    %v968 = vadd.f32 %v456, %v884
    %v969 = vadd.f32 %v457, %v886
    %v970 = vadd.f32 %v458, %v888
    %v971 = vadd.f32 %v459, %v890
    %v972 = vadd.f32 %v460, %v892
    %v973 = vadd.f32 %v461, %v894
    %v974 = vadd.f32 %v462, %v896
    %v975 = vadd.f32 %v463, %v898
    %v976 = vadd.f32 %v464, %v900
    %v977 = vadd.f32 %v465, %v902
    %v978 = vadd.f32 %v466, %v904
    %v979 = vadd.f32 %v467, %v906
    %v980 = vadd.f32 %v468, %v908
    %v981 = vadd.f32 %v469, %v910
    %v982 = vadd.f32 %v470, %v912
    %v983 = vadd.f32 %v471, %v914
    %v984 = vadd.f32 %v472, %v916
    %v985 = vadd.f32 %v473, %v918
    %v986 = vadd.f32 %v474, %v920
    %v987 = vadd.f32 %v475, %v922
    %v988 = vadd.f32 %v476, %v924
    %v989 = vsub.f32 %v255, %v925
    %v990 = vsub.f32 %v257, %v926
    %v991 = vsub.f32 %v259, %v927
    %v992 = vsub.f32 %v261, %v928
    %v993 = vsub.f32 %v265, %v929
    %v994 = vsub.f32 %v267, %v930
    %v995 = vsub.f32 %v269, %v931
    %v996 = vsub.f32 %v271, %v932
    %v997 = vsub.f32 %v275, %v933
    %v998 = vsub.f32 %v277, %v934
    %v999 = vsub.f32 %v279, %v935
    %v1000 = vsub.f32 %v281, %v936
    %v1001 = vsub.f32 %v285, %v937
    %v1002 = vsub.f32 %v287, %v938
    %v1003 = vsub.f32 %v289, %v939
    %v1004 = vsub.f32 %v291, %v940
    %v1005 = vsub.f32 %v295, %v941
    %v1006 = vsub.f32 %v297, %v942
    %v1007 = vsub.f32 %v299, %v943
    %v1008 = vsub.f32 %v301, %v944
    %v1009 = vsub.f32 %v305, %v945
    %v1010 = vsub.f32 %v307, %v946
    %v1011 = vsub.f32 %v309, %v947
    %v1012 = vsub.f32 %v311, %v948
    %v1013 = vsub.f32 %v315, %v949
    %v1014 = vsub.f32 %v317, %v950
    %v1015 = vsub.f32 %v319, %v951
    %v1016 = vsub.f32 %v321, %v952
    %v1017 = vsub.f32 %v325, %v953
    %v1018 = vsub.f32 %v327, %v954
    %v1019 = vsub.f32 %v329, %v955
    %v1020 = vsub.f32 %v331, %v956
    %v1021 = vsub.f32 %v335, %v957
    %v1022 = vsub.f32 %v337, %v958
    %v1023 = vsub.f32 %v339, %v959
    %v1024 = vsub.f32 %v341, %v960
    %v1025 = vsub.f32 %v345, %v961
    %v1026 = vsub.f32 %v347, %v962
    %v1027 = vsub.f32 %v349, %v963
    %v1028 = vsub.f32 %v351, %v964
    %v1029 = vsub.f32 %v355, %v965
    %v1030 = vsub.f32 %v357, %v966
    %v1031 = vsub.f32 %v359, %v967
    %v1032 = vsub.f32 %v361, %v968
    %v1033 = vsub.f32 %v365, %v969
    %v1034 = vsub.f32 %v367, %v970
    %v1035 = vsub.f32 %v369, %v971
    %v1036 = vsub.f32 %v371, %v972
    %v1037 = vsub.f32 %v375, %v973
    %v1038 = vsub.f32 %v377, %v974
    %v1039 = vsub.f32 %v379, %v975
    %v1040 = vsub.f32 %v381, %v976
    %v1041 = vsub.f32 %v385, %v977
    %v1042 = vsub.f32 %v387, %v978
    %v1043 = vsub.f32 %v389, %v979
    %v1044 = vsub.f32 %v391, %v980
    %v1045 = vsub.f32 %v395, %v981
    %v1046 = vsub.f32 %v397, %v982
    %v1047 = vsub.f32 %v399, %v983
    %v1048 = vsub.f32 %v401, %v984
    %v1049 = vsub.f32 %v405, %v985
    %v1050 = vsub.f32 %v407, %v986
    %v1051 = vsub.f32 %v409, %v987
    %v1052 = vsub.f32 %v411, %v988
    %v1053 = vmax.f32 %v989, -34.538776
    %v1054 = vmax.f32 %v990, -34.538776
    %v1055 = vmax.f32 %v991, -34.538776
    %v1056 = vmax.f32 %v992, -34.538776
    %v1057 = vmax.f32 %v993, -34.538776
    %v1058 = vmax.f32 %v994, -34.538776
    %v1059 = vmax.f32 %v995, -34.538776
    %v1060 = vmax.f32 %v996, -34.538776
    %v1061 = vmax.f32 %v997, -34.538776
    %v1062 = vmax.f32 %v998, -34.538776
    %v1063 = vmax.f32 %v999, -34.538776
    %v1064 = vmax.f32 %v1000, -34.538776
    %v1065 = vmax.f32 %v1001, -34.538776
    %v1066 = vmax.f32 %v1002, -34.538776
    %v1067 = vmax.f32 %v1003, -34.538776
    %v1068 = vmax.f32 %v1004, -34.538776
    %v1069 = vmax.f32 %v1005, -34.538776
    %v1070 = vmax.f32 %v1006, -34.538776
    %v1071 = vmax.f32 %v1007, -34.538776
    %v1072 = vmax.f32 %v1008, -34.538776
    %v1073 = vmax.f32 %v1009, -34.538776
    %v1074 = vmax.f32 %v1010, -34.538776
    %v1075 = vmax.f32 %v1011, -34.538776
    %v1076 = vmax.f32 %v1012, -34.538776
    %v1077 = vmax.f32 %v1013, -34.538776
    %v1078 = vmax.f32 %v1014, -34.538776
    %v1079 = vmax.f32 %v1015, -34.538776
    %v1080 = vmax.f32 %v1016, -34.538776
    %v1081 = vmax.f32 %v1017, -34.538776
    %v1082 = vmax.f32 %v1018, -34.538776
    %v1083 = vmax.f32 %v1019, -34.538776
    %v1084 = vmax.f32 %v1020, -34.538776
    %v1085 = vmax.f32 %v1021, -34.538776
    %v1086 = vmax.f32 %v1022, -34.538776
    %v1087 = vmax.f32 %v1023, -34.538776
    %v1088 = vmax.f32 %v1024, -34.538776
    %v1089 = vmax.f32 %v1025, -34.538776
    %v1090 = vmax.f32 %v1026, -34.538776
    %v1091 = vmax.f32 %v1027, -34.538776
    %v1092 = vmax.f32 %v1028, -34.538776
    %v1093 = vmax.f32 %v1029, -34.538776
    %v1094 = vmax.f32 %v1030, -34.538776
    %v1095 = vmax.f32 %v1031, -34.538776
    %v1096 = vmax.f32 %v1032, -34.538776
    %v1097 = vmax.f32 %v1033, -34.538776
    %v1098 = vmax.f32 %v1034, -34.538776
    %v1099 = vmax.f32 %v1035, -34.538776
    %v1100 = vmax.f32 %v1036, -34.538776
    %v1101 = vmax.f32 %v1037, -34.538776
    %v1102 = vmax.f32 %v1038, -34.538776
    %v1103 = vmax.f32 %v1039, -34.538776
    %v1104 = vmax.f32 %v1040, -34.538776
    %v1105 = vmax.f32 %v1041, -34.538776
    %v1106 = vmax.f32 %v1042, -34.538776
    %v1107 = vmax.f32 %v1043, -34.538776
    %v1108 = vmax.f32 %v1044, -34.538776
    %v1109 = vmax.f32 %v1045, -34.538776
    %v1110 = vmax.f32 %v1046, -34.538776
    %v1111 = vmax.f32 %v1047, -34.538776
    %v1112 = vmax.f32 %v1048, -34.538776
    %v1113 = vmax.f32 %v1049, -34.538776
    %v1114 = vmax.f32 %v1050, -34.538776
    %v1115 = vmax.f32 %v1051, -34.538776
    %v1116 = vmax.f32 %v1052, -34.538776
    %v1117 = vsub.f32 0.0, %v925
    %v1118 = vsub.f32 0.0, %v926
    %v1119 = vsub.f32 0.0, %v927
    %v1120 = vsub.f32 0.0, %v928
    %v1121 = vsub.f32 0.0, %v929
    %v1122 = vsub.f32 0.0, %v930
    %v1123 = vsub.f32 0.0, %v931
    %v1124 = vsub.f32 0.0, %v932
    %v1125 = vsub.f32 0.0, %v933
    %v1126 = vsub.f32 0.0, %v934
    %v1127 = vsub.f32 0.0, %v935
    %v1128 = vsub.f32 0.0, %v936
    %v1129 = vsub.f32 0.0, %v937
    %v1130 = vsub.f32 0.0, %v938
    %v1131 = vsub.f32 0.0, %v939
    %v1132 = vsub.f32 0.0, %v940
    %v1133 = vsub.f32 0.0, %v941
    %v1134 = vsub.f32 0.0, %v942
    %v1135 = vsub.f32 0.0, %v943
    %v1136 = vsub.f32 0.0, %v944
    %v1137 = vsub.f32 0.0, %v945
    %v1138 = vsub.f32 0.0, %v946
    %v1139 = vsub.f32 0.0, %v947
    %v1140 = vsub.f32 0.0, %v948
    %v1141 = vsub.f32 0.0, %v949
    %v1142 = vsub.f32 0.0, %v950
    %v1143 = vsub.f32 0.0, %v951
    %v1144 = vsub.f32 0.0, %v952
    %v1145 = vsub.f32 0.0, %v953
    %v1146 = vsub.f32 0.0, %v954
    %v1147 = vsub.f32 0.0, %v955
    %v1148 = vsub.f32 0.0, %v956
    %v1149 = vsub.f32 0.0, %v957
    %v1150 = vsub.f32 0.0, %v958
    %v1151 = vsub.f32 0.0, %v959
    %v1152 = vsub.f32 0.0, %v960
    %v1153 = vsub.f32 0.0, %v961
    %v1154 = vsub.f32 0.0, %v962
    %v1155 = vsub.f32 0.0, %v963
    %v1156 = vsub.f32 0.0, %v964
    %v1157 = vsub.f32 0.0, %v965
    %v1158 = vsub.f32 0.0, %v966
    %v1159 = vsub.f32 0.0, %v967
    %v1160 = vsub.f32 0.0, %v968
    %v1161 = vsub.f32 0.0, %v969
    %v1162 = vsub.f32 0.0, %v970
    %v1163 = vsub.f32 0.0, %v971
    %v1164 = vsub.f32 0.0, %v972
    %v1165 = vsub.f32 0.0, %v973
    %v1166 = vsub.f32 0.0, %v974
    %v1167 = vsub.f32 0.0, %v975
    %v1168 = vsub.f32 0.0, %v976
    %v1169 = vsub.f32 0.0, %v977
    %v1170 = vsub.f32 0.0, %v978
    %v1171 = vsub.f32 0.0, %v979
    %v1172 = vsub.f32 0.0, %v980
    %v1173 = vsub.f32 0.0, %v981
    %v1174 = vsub.f32 0.0, %v982
    %v1175 = vsub.f32 0.0, %v983
    %v1176 = vsub.f32 0.0, %v984
    %v1177 = vsub.f32 0.0, %v985
    %v1178 = vsub.f32 0.0, %v986
    %v1179 = vsub.f32 0.0, %v987
    %v1180 = vsub.f32 0.0, %v988
    %v1181 = vmax.f32 %v1117, -34.538776
    %v1182 = vmax.f32 %v1118, -34.538776
    %v1183 = vmax.f32 %v1119, -34.538776
    %v1184 = vmax.f32 %v1120, -34.538776
    %v1185 = vmax.f32 %v1121, -34.538776
    %v1186 = vmax.f32 %v1122, -34.538776
    %v1187 = vmax.f32 %v1123, -34.538776
    %v1188 = vmax.f32 %v1124, -34.538776
    %v1189 = vmax.f32 %v1125, -34.538776
    %v1190 = vmax.f32 %v1126, -34.538776
    %v1191 = vmax.f32 %v1127, -34.538776
    %v1192 = vmax.f32 %v1128, -34.538776
    %v1193 = vmax.f32 %v1129, -34.538776
    %v1194 = vmax.f32 %v1130, -34.538776
    %v1195 = vmax.f32 %v1131, -34.538776
    %v1196 = vmax.f32 %v1132, -34.538776
    %v1197 = vmax.f32 %v1133, -34.538776
    %v1198 = vmax.f32 %v1134, -34.538776
    %v1199 = vmax.f32 %v1135, -34.538776
    %v1200 = vmax.f32 %v1136, -34.538776
    %v1201 = vmax.f32 %v1137, -34.538776
    %v1202 = vmax.f32 %v1138, -34.538776
    %v1203 = vmax.f32 %v1139, -34.538776
    %v1204 = vmax.f32 %v1140, -34.538776
    %v1205 = vmax.f32 %v1141, -34.538776
    %v1206 = vmax.f32 %v1142, -34.538776
    %v1207 = vmax.f32 %v1143, -34.538776
    %v1208 = vmax.f32 %v1144, -34.538776
    %v1209 = vmax.f32 %v1145, -34.538776
    %v1210 = vmax.f32 %v1146, -34.538776
    %v1211 = vmax.f32 %v1147, -34.538776
    %v1212 = vmax.f32 %v1148, -34.538776
    %v1213 = vmax.f32 %v1149, -34.538776
    %v1214 = vmax.f32 %v1150, -34.538776
    %v1215 = vmax.f32 %v1151, -34.538776
    %v1216 = vmax.f32 %v1152, -34.538776
    %v1217 = vmax.f32 %v1153, -34.538776
    %v1218 = vmax.f32 %v1154, -34.538776
    %v1219 = vmax.f32 %v1155, -34.538776
    %v1220 = vmax.f32 %v1156, -34.538776
    %v1221 = vmax.f32 %v1157, -34.538776
    %v1222 = vmax.f32 %v1158, -34.538776
    %v1223 = vmax.f32 %v1159, -34.538776
    %v1224 = vmax.f32 %v1160, -34.538776
    %v1225 = vmax.f32 %v1161, -34.538776
    %v1226 = vmax.f32 %v1162, -34.538776
    %v1227 = vmax.f32 %v1163, -34.538776
    %v1228 = vmax.f32 %v1164, -34.538776
    %v1229 = vmax.f32 %v1165, -34.538776
    %v1230 = vmax.f32 %v1166, -34.538776
    %v1231 = vmax.f32 %v1167, -34.538776
    %v1232 = vmax.f32 %v1168, -34.538776
    %v1233 = vmax.f32 %v1169, -34.538776
    %v1234 = vmax.f32 %v1170, -34.538776
    %v1235 = vmax.f32 %v1171, -34.538776
    %v1236 = vmax.f32 %v1172, -34.538776
    %v1237 = vmax.f32 %v1173, -34.538776
    %v1238 = vmax.f32 %v1174, -34.538776
    %v1239 = vmax.f32 %v1175, -34.538776
    %v1240 = vmax.f32 %v1176, -34.538776
    %v1241 = vmax.f32 %v1177, -34.538776
    %v1242 = vmax.f32 %v1178, -34.538776
    %v1243 = vmax.f32 %v1179, -34.538776
    %v1244 = vmax.f32 %v1180, -34.538776
    %s1245 = sld [smem:[#allocation3]]
    %v1246 = vld [vmem:[#allocation4] sm:$0xff]
    %v1247 = vld [vmem:[#allocation4 + $0x8] sm:$0xff]
    %v1248 = vld [vmem:[#allocation4 + $0x10] sm:$0xff]
    %v1249 = vld [vmem:[#allocation4 + $0x18] sm:$0xff]
    %v1250 = vld [vmem:[#allocation4 + $0x20] sm:$0xff]
    %v1251 = vld [vmem:[#allocation4 + $0x28] sm:$0xff]
    %v1252 = vld [vmem:[#allocation4 + $0x30] sm:$0xff]
    %v1253 = vld [vmem:[#allocation4 + $0x38] sm:$0xff]
    %v1254 = vld [vmem:[#allocation4 + $0x40] sm:$0xff]
    %v1255 = vld [vmem:[#allocation4 + $0x48] sm:$0xff]
    %v1256 = vld [vmem:[#allocation4 + $0x50] sm:$0xff]
    %v1257 = vld [vmem:[#allocation4 + $0x58] sm:$0xff]
    %v1258 = vld [vmem:[#allocation4 + $0x60] sm:$0xff]
    %v1259 = vld [vmem:[#allocation4 + $0x68] sm:$0xff]
    %v1260 = vld [vmem:[#allocation4 + $0x70] sm:$0xff]
    %v1261 = vld [vmem:[#allocation4 + $0x78] sm:$0xff]
    %v1262 = vld [vmem:[#allocation4 + $0x80] sm:$0xff]
    %v1263 = vld [vmem:[#allocation4 + $0x88] sm:$0xff]
    %v1264 = vld [vmem:[#allocation4 + $0x90] sm:$0xff]
    %v1265 = vld [vmem:[#allocation4 + $0x98] sm:$0xff]
    %v1266 = vld [vmem:[#allocation4 + $0xa0] sm:$0xff]
    %v1267 = vld [vmem:[#allocation4 + $0xa8] sm:$0xff]
    %v1268 = vld [vmem:[#allocation4 + $0xb0] sm:$0xff]
    %v1269 = vld [vmem:[#allocation4 + $0xb8] sm:$0xff]
    %v1270 = vld [vmem:[#allocation4 + $0xc0] sm:$0xff]
    %v1271 = vld [vmem:[#allocation4 + $0xc8] sm:$0xff]
    %v1272 = vld [vmem:[#allocation4 + $0xd0] sm:$0xff]
    %v1273 = vld [vmem:[#allocation4 + $0xd8] sm:$0xff]
    %v1274 = vld [vmem:[#allocation4 + $0xe0] sm:$0xff]
    %v1275 = vld [vmem:[#allocation4 + $0xe8] sm:$0xff]
    %v1276 = vld [vmem:[#allocation4 + $0xf0] sm:$0xff]
    %v1277 = vld [vmem:[#allocation4 + $0xf8] sm:$0xff]
    %v1278 = vunpack.c.l.bf16 %v1246
    %v1279 = vunpack.c.h.bf16 %v1246
    %v1280 = vunpack.c.l.bf16 %v1247
    %v1281 = vunpack.c.h.bf16 %v1247
    %v1282 = vunpack.c.l.bf16 %v1248
    %v1283 = vunpack.c.h.bf16 %v1248
    %v1284 = vunpack.c.l.bf16 %v1249
    %v1285 = vunpack.c.h.bf16 %v1249
    %v1286 = vunpack.c.l.bf16 %v1250
    %v1287 = vunpack.c.h.bf16 %v1250
    %v1288 = vunpack.c.l.bf16 %v1251
    %v1289 = vunpack.c.h.bf16 %v1251
    %v1290 = vunpack.c.l.bf16 %v1252
    %v1291 = vunpack.c.h.bf16 %v1252
    %v1292 = vunpack.c.l.bf16 %v1253
    %v1293 = vunpack.c.h.bf16 %v1253
    %v1294 = vunpack.c.l.bf16 %v1254
    %v1295 = vunpack.c.h.bf16 %v1254
    %v1296 = vunpack.c.l.bf16 %v1255
    %v1297 = vunpack.c.h.bf16 %v1255
    %v1298 = vunpack.c.l.bf16 %v1256
    %v1299 = vunpack.c.h.bf16 %v1256
    %v1300 = vunpack.c.l.bf16 %v1257
    %v1301 = vunpack.c.h.bf16 %v1257
    %v1302 = vunpack.c.l.bf16 %v1258
    %v1303 = vunpack.c.h.bf16 %v1258
    %v1304 = vunpack.c.l.bf16 %v1259
    %v1305 = vunpack.c.h.bf16 %v1259
    %v1306 = vunpack.c.l.bf16 %v1260
    %v1307 = vunpack.c.h.bf16 %v1260
    %v1308 = vunpack.c.l.bf16 %v1261
    %v1309 = vunpack.c.h.bf16 %v1261
    %v1310 = vunpack.c.l.bf16 %v1262
    %v1311 = vunpack.c.h.bf16 %v1262
    %v1312 = vunpack.c.l.bf16 %v1263
    %v1313 = vunpack.c.h.bf16 %v1263
    %v1314 = vunpack.c.l.bf16 %v1264
    %v1315 = vunpack.c.h.bf16 %v1264
    %v1316 = vunpack.c.l.bf16 %v1265
    %v1317 = vunpack.c.h.bf16 %v1265
    %v1318 = vunpack.c.l.bf16 %v1266
    %v1319 = vunpack.c.h.bf16 %v1266
    %v1320 = vunpack.c.l.bf16 %v1267
    %v1321 = vunpack.c.h.bf16 %v1267
    %v1322 = vunpack.c.l.bf16 %v1268
    %v1323 = vunpack.c.h.bf16 %v1268
    %v1324 = vunpack.c.l.bf16 %v1269
    %v1325 = vunpack.c.h.bf16 %v1269
    %v1326 = vunpack.c.l.bf16 %v1270
    %v1327 = vunpack.c.h.bf16 %v1270
    %v1328 = vunpack.c.l.bf16 %v1271
    %v1329 = vunpack.c.h.bf16 %v1271
    %v1330 = vunpack.c.l.bf16 %v1272
    %v1331 = vunpack.c.h.bf16 %v1272
    %v1332 = vunpack.c.l.bf16 %v1273
    %v1333 = vunpack.c.h.bf16 %v1273
    %v1334 = vunpack.c.l.bf16 %v1274
    %v1335 = vunpack.c.h.bf16 %v1274
    %v1336 = vunpack.c.l.bf16 %v1275
    %v1337 = vunpack.c.h.bf16 %v1275
    %v1338 = vunpack.c.l.bf16 %v1276
    %v1339 = vunpack.c.h.bf16 %v1276
    %v1340 = vunpack.c.l.bf16 %v1277
    %v1341 = vunpack.c.h.bf16 %v1277
    %v1342 = vstv %s1245
    %v1343 = vmul.f32 %v1342, %v1278
    %v1344 = vmul.f32 %v1342, %v1279
    %v1345 = vmul.f32 %v1342, %v1280
    %v1346 = vmul.f32 %v1342, %v1281
    %v1347 = vmul.f32 %v1342, %v1282
    %v1348 = vmul.f32 %v1342, %v1283
    %v1349 = vmul.f32 %v1342, %v1284
    %v1350 = vmul.f32 %v1342, %v1285
    %v1351 = vmul.f32 %v1342, %v1286
    %v1352 = vmul.f32 %v1342, %v1287
    %v1353 = vmul.f32 %v1342, %v1288
    %v1354 = vmul.f32 %v1342, %v1289
    %v1355 = vmul.f32 %v1342, %v1290
    %v1356 = vmul.f32 %v1342, %v1291
    %v1357 = vmul.f32 %v1342, %v1292
    %v1358 = vmul.f32 %v1342, %v1293
    %v1359 = vmul.f32 %v1342, %v1294
    %v1360 = vmul.f32 %v1342, %v1295
    %v1361 = vmul.f32 %v1342, %v1296
    %v1362 = vmul.f32 %v1342, %v1297
    %v1363 = vmul.f32 %v1342, %v1298
    %v1364 = vmul.f32 %v1342, %v1299
    %v1365 = vmul.f32 %v1342, %v1300
    %v1366 = vmul.f32 %v1342, %v1301
    %v1367 = vmul.f32 %v1342, %v1302
    %v1368 = vmul.f32 %v1342, %v1303
    %v1369 = vmul.f32 %v1342, %v1304
    %v1370 = vmul.f32 %v1342, %v1305
    %v1371 = vmul.f32 %v1342, %v1306
    %v1372 = vmul.f32 %v1342, %v1307
    %v1373 = vmul.f32 %v1342, %v1308
    %v1374 = vmul.f32 %v1342, %v1309
    %v1375 = vmul.f32 %v1342, %v1310
    %v1376 = vmul.f32 %v1342, %v1311
    %v1377 = vmul.f32 %v1342, %v1312
    %v1378 = vmul.f32 %v1342, %v1313
    %v1379 = vmul.f32 %v1342, %v1314
    %v1380 = vmul.f32 %v1342, %v1315
    %v1381 = vmul.f32 %v1342, %v1316
    %v1382 = vmul.f32 %v1342, %v1317
    %v1383 = vmul.f32 %v1342, %v1318
    %v1384 = vmul.f32 %v1342, %v1319
    %v1385 = vmul.f32 %v1342, %v1320
    %v1386 = vmul.f32 %v1342, %v1321
    %v1387 = vmul.f32 %v1342, %v1322
    %v1388 = vmul.f32 %v1342, %v1323
    %v1389 = vmul.f32 %v1342, %v1324
    %v1390 = vmul.f32 %v1342, %v1325
    %v1391 = vmul.f32 %v1342, %v1326
    %v1392 = vmul.f32 %v1342, %v1327
    %v1393 = vmul.f32 %v1342, %v1328
    %v1394 = vmul.f32 %v1342, %v1329
    %v1395 = vmul.f32 %v1342, %v1330
    %v1396 = vmul.f32 %v1342, %v1331
    %v1397 = vmul.f32 %v1342, %v1332
    %v1398 = vmul.f32 %v1342, %v1333
    %v1399 = vmul.f32 %v1342, %v1334
    %v1400 = vmul.f32 %v1342, %v1335
    %v1401 = vmul.f32 %v1342, %v1336
    %v1402 = vmul.f32 %v1342, %v1337
    %v1403 = vmul.f32 %v1342, %v1338
    %v1404 = vmul.f32 %v1342, %v1339
    %v1405 = vmul.f32 %v1342, %v1340
    %v1406 = vmul.f32 %v1342, %v1341
    %s1407 = sld [smem:[#allocation3 + $0x1]]
    %s1408 = scalar_lea.vmem [#allocation4], 256
    %v1409 = vld [vmem:[%s1408] sm:$0xff]
    %v1410 = vld [vmem:[%s1408 + $0x8] sm:$0xff]
    %v1411 = vld [vmem:[%s1408 + $0x10] sm:$0xff]
    %v1412 = vld [vmem:[%s1408 + $0x18] sm:$0xff]
    %v1413 = vld [vmem:[%s1408 + $0x20] sm:$0xff]
    %v1414 = vld [vmem:[%s1408 + $0x28] sm:$0xff]
    %v1415 = vld [vmem:[%s1408 + $0x30] sm:$0xff]
    %v1416 = vld [vmem:[%s1408 + $0x38] sm:$0xff]
    %v1417 = vld [vmem:[%s1408 + $0x40] sm:$0xff]
    %v1418 = vld [vmem:[%s1408 + $0x48] sm:$0xff]
    %v1419 = vld [vmem:[%s1408 + $0x50] sm:$0xff]
    %v1420 = vld [vmem:[%s1408 + $0x58] sm:$0xff]
    %v1421 = vld [vmem:[%s1408 + $0x60] sm:$0xff]
    %v1422 = vld [vmem:[%s1408 + $0x68] sm:$0xff]
    %v1423 = vld [vmem:[%s1408 + $0x70] sm:$0xff]
    %v1424 = vld [vmem:[%s1408 + $0x78] sm:$0xff]
    %v1425 = vld [vmem:[%s1408 + $0x80] sm:$0xff]
    %v1426 = vld [vmem:[%s1408 + $0x88] sm:$0xff]
    %v1427 = vld [vmem:[%s1408 + $0x90] sm:$0xff]
    %v1428 = vld [vmem:[%s1408 + $0x98] sm:$0xff]
    %v1429 = vld [vmem:[%s1408 + $0xa0] sm:$0xff]
    %v1430 = vld [vmem:[%s1408 + $0xa8] sm:$0xff]
    %v1431 = vld [vmem:[%s1408 + $0xb0] sm:$0xff]
    %v1432 = vld [vmem:[%s1408 + $0xb8] sm:$0xff]
    %v1433 = vld [vmem:[%s1408 + $0xc0] sm:$0xff]
    %v1434 = vld [vmem:[%s1408 + $0xc8] sm:$0xff]
    %v1435 = vld [vmem:[%s1408 + $0xd0] sm:$0xff]
    %v1436 = vld [vmem:[%s1408 + $0xd8] sm:$0xff]
    %v1437 = vld [vmem:[%s1408 + $0xe0] sm:$0xff]
    %v1438 = vld [vmem:[%s1408 + $0xe8] sm:$0xff]
    %v1439 = vld [vmem:[%s1408 + $0xf0] sm:$0xff]
    %v1440 = vld [vmem:[%s1408 + $0xf8] sm:$0xff]
    %v1441 = vunpack.c.l.bf16 %v1409
    %v1442 = vunpack.c.h.bf16 %v1409
    %v1443 = vunpack.c.l.bf16 %v1410
    %v1444 = vunpack.c.h.bf16 %v1410
    %v1445 = vunpack.c.l.bf16 %v1411
    %v1446 = vunpack.c.h.bf16 %v1411
    %v1447 = vunpack.c.l.bf16 %v1412
    %v1448 = vunpack.c.h.bf16 %v1412
    %v1449 = vunpack.c.l.bf16 %v1413
    %v1450 = vunpack.c.h.bf16 %v1413
    %v1451 = vunpack.c.l.bf16 %v1414
    %v1452 = vunpack.c.h.bf16 %v1414
    %v1453 = vunpack.c.l.bf16 %v1415
    %v1454 = vunpack.c.h.bf16 %v1415
    %v1455 = vunpack.c.l.bf16 %v1416
    %v1456 = vunpack.c.h.bf16 %v1416
    %v1457 = vunpack.c.l.bf16 %v1417
    %v1458 = vunpack.c.h.bf16 %v1417
    %v1459 = vunpack.c.l.bf16 %v1418
    %v1460 = vunpack.c.h.bf16 %v1418
    %v1461 = vunpack.c.l.bf16 %v1419
    %v1462 = vunpack.c.h.bf16 %v1419
    %v1463 = vunpack.c.l.bf16 %v1420
    %v1464 = vunpack.c.h.bf16 %v1420
    %v1465 = vunpack.c.l.bf16 %v1421
    %v1466 = vunpack.c.h.bf16 %v1421
    %v1467 = vunpack.c.l.bf16 %v1422
    %v1468 = vunpack.c.h.bf16 %v1422
    %v1469 = vunpack.c.l.bf16 %v1423
    %v1470 = vunpack.c.h.bf16 %v1423
    %v1471 = vunpack.c.l.bf16 %v1424
    %v1472 = vunpack.c.h.bf16 %v1424
    %v1473 = vunpack.c.l.bf16 %v1425
    %v1474 = vunpack.c.h.bf16 %v1425
    %v1475 = vunpack.c.l.bf16 %v1426
    %v1476 = vunpack.c.h.bf16 %v1426
    %v1477 = vunpack.c.l.bf16 %v1427
    %v1478 = vunpack.c.h.bf16 %v1427
    %v1479 = vunpack.c.l.bf16 %v1428
    %v1480 = vunpack.c.h.bf16 %v1428
    %v1481 = vunpack.c.l.bf16 %v1429
    %v1482 = vunpack.c.h.bf16 %v1429
    %v1483 = vunpack.c.l.bf16 %v1430
    %v1484 = vunpack.c.h.bf16 %v1430
    %v1485 = vunpack.c.l.bf16 %v1431
    %v1486 = vunpack.c.h.bf16 %v1431
    %v1487 = vunpack.c.l.bf16 %v1432
    %v1488 = vunpack.c.h.bf16 %v1432
    %v1489 = vunpack.c.l.bf16 %v1433
    %v1490 = vunpack.c.h.bf16 %v1433
    %v1491 = vunpack.c.l.bf16 %v1434
    %v1492 = vunpack.c.h.bf16 %v1434
    %v1493 = vunpack.c.l.bf16 %v1435
    %v1494 = vunpack.c.h.bf16 %v1435
    %v1495 = vunpack.c.l.bf16 %v1436
    %v1496 = vunpack.c.h.bf16 %v1436
    %v1497 = vunpack.c.l.bf16 %v1437
    %v1498 = vunpack.c.h.bf16 %v1437
    %v1499 = vunpack.c.l.bf16 %v1438
    %v1500 = vunpack.c.h.bf16 %v1438
    %v1501 = vunpack.c.l.bf16 %v1439
    %v1502 = vunpack.c.h.bf16 %v1439
    %v1503 = vunpack.c.l.bf16 %v1440
    %v1504 = vunpack.c.h.bf16 %v1440
    %v1505 = vstv %s1407
    %v1506 = vmul.f32 %v1505, %v1441
    %v1507 = vmul.f32 %v1505, %v1442
    %v1508 = vmul.f32 %v1505, %v1443
    %v1509 = vmul.f32 %v1505, %v1444
    %v1510 = vmul.f32 %v1505, %v1445
    %v1511 = vmul.f32 %v1505, %v1446
    %v1512 = vmul.f32 %v1505, %v1447
    %v1513 = vmul.f32 %v1505, %v1448
    %v1514 = vmul.f32 %v1505, %v1449
    %v1515 = vmul.f32 %v1505, %v1450
    %v1516 = vmul.f32 %v1505, %v1451
    %v1517 = vmul.f32 %v1505, %v1452
    %v1518 = vmul.f32 %v1505, %v1453
    %v1519 = vmul.f32 %v1505, %v1454
    %v1520 = vmul.f32 %v1505, %v1455
    %v1521 = vmul.f32 %v1505, %v1456
    %v1522 = vmul.f32 %v1505, %v1457
    %v1523 = vmul.f32 %v1505, %v1458
    %v1524 = vmul.f32 %v1505, %v1459
    %v1525 = vmul.f32 %v1505, %v1460
    %v1526 = vmul.f32 %v1505, %v1461
    %v1527 = vmul.f32 %v1505, %v1462
    %v1528 = vmul.f32 %v1505, %v1463
    %v1529 = vmul.f32 %v1505, %v1464
    %v1530 = vmul.f32 %v1505, %v1465
    %v1531 = vmul.f32 %v1505, %v1466
    %v1532 = vmul.f32 %v1505, %v1467
    %v1533 = vmul.f32 %v1505, %v1468
    %v1534 = vmul.f32 %v1505, %v1469
    %v1535 = vmul.f32 %v1505, %v1470
    %v1536 = vmul.f32 %v1505, %v1471
    %v1537 = vmul.f32 %v1505, %v1472
    %v1538 = vmul.f32 %v1505, %v1473
    %v1539 = vmul.f32 %v1505, %v1474
    %v1540 = vmul.f32 %v1505, %v1475
    %v1541 = vmul.f32 %v1505, %v1476
    %v1542 = vmul.f32 %v1505, %v1477
    %v1543 = vmul.f32 %v1505, %v1478
    %v1544 = vmul.f32 %v1505, %v1479
    %v1545 = vmul.f32 %v1505, %v1480
    %v1546 = vmul.f32 %v1505, %v1481
    %v1547 = vmul.f32 %v1505, %v1482
    %v1548 = vmul.f32 %v1505, %v1483
    %v1549 = vmul.f32 %v1505, %v1484
    %v1550 = vmul.f32 %v1505, %v1485
    %v1551 = vmul.f32 %v1505, %v1486
    %v1552 = vmul.f32 %v1505, %v1487
    %v1553 = vmul.f32 %v1505, %v1488
    %v1554 = vmul.f32 %v1505, %v1489
    %v1555 = vmul.f32 %v1505, %v1490
    %v1556 = vmul.f32 %v1505, %v1491
    %v1557 = vmul.f32 %v1505, %v1492
    %v1558 = vmul.f32 %v1505, %v1493
    %v1559 = vmul.f32 %v1505, %v1494
    %v1560 = vmul.f32 %v1505, %v1495
    %v1561 = vmul.f32 %v1505, %v1496
    %v1562 = vmul.f32 %v1505, %v1497
    %v1563 = vmul.f32 %v1505, %v1498
    %v1564 = vmul.f32 %v1505, %v1499
    %v1565 = vmul.f32 %v1505, %v1500
    %v1566 = vmul.f32 %v1505, %v1501
    %v1567 = vmul.f32 %v1505, %v1502
    %v1568 = vmul.f32 %v1505, %v1503
    %v1569 = vmul.f32 %v1505, %v1504
    %v1570 = vadd.f32 %v1343, %v1506
    %v1571 = vadd.f32 %v1344, %v1507
    %v1572 = vadd.f32 %v1345, %v1508
    %v1573 = vadd.f32 %v1346, %v1509
    %v1574 = vadd.f32 %v1347, %v1510
    %v1575 = vadd.f32 %v1348, %v1511
    %v1576 = vadd.f32 %v1349, %v1512
    %v1577 = vadd.f32 %v1350, %v1513
    %v1578 = vadd.f32 %v1351, %v1514
    %v1579 = vadd.f32 %v1352, %v1515
    %v1580 = vadd.f32 %v1353, %v1516
    %v1581 = vadd.f32 %v1354, %v1517
    %v1582 = vadd.f32 %v1355, %v1518
    %v1583 = vadd.f32 %v1356, %v1519
    %v1584 = vadd.f32 %v1357, %v1520
    %v1585 = vadd.f32 %v1358, %v1521
    %v1586 = vadd.f32 %v1359, %v1522
    %v1587 = vadd.f32 %v1360, %v1523
    %v1588 = vadd.f32 %v1361, %v1524
    %v1589 = vadd.f32 %v1362, %v1525
    %v1590 = vadd.f32 %v1363, %v1526
    %v1591 = vadd.f32 %v1364, %v1527
    %v1592 = vadd.f32 %v1365, %v1528
    %v1593 = vadd.f32 %v1366, %v1529
    %v1594 = vadd.f32 %v1367, %v1530
    %v1595 = vadd.f32 %v1368, %v1531
    %v1596 = vadd.f32 %v1369, %v1532
    %v1597 = vadd.f32 %v1370, %v1533
    %v1598 = vadd.f32 %v1371, %v1534
    %v1599 = vadd.f32 %v1372, %v1535
    %v1600 = vadd.f32 %v1373, %v1536
    %v1601 = vadd.f32 %v1374, %v1537
    %v1602 = vadd.f32 %v1375, %v1538
    %v1603 = vadd.f32 %v1376, %v1539
    %v1604 = vadd.f32 %v1377, %v1540
    %v1605 = vadd.f32 %v1378, %v1541
    %v1606 = vadd.f32 %v1379, %v1542
    %v1607 = vadd.f32 %v1380, %v1543
    %v1608 = vadd.f32 %v1381, %v1544
    %v1609 = vadd.f32 %v1382, %v1545
    %v1610 = vadd.f32 %v1383, %v1546
    %v1611 = vadd.f32 %v1384, %v1547
    %v1612 = vadd.f32 %v1385, %v1548
    %v1613 = vadd.f32 %v1386, %v1549
    %v1614 = vadd.f32 %v1387, %v1550
    %v1615 = vadd.f32 %v1388, %v1551
    %v1616 = vadd.f32 %v1389, %v1552
    %v1617 = vadd.f32 %v1390, %v1553
    %v1618 = vadd.f32 %v1391, %v1554
    %v1619 = vadd.f32 %v1392, %v1555
    %v1620 = vadd.f32 %v1393, %v1556
    %v1621 = vadd.f32 %v1394, %v1557
    %v1622 = vadd.f32 %v1395, %v1558
    %v1623 = vadd.f32 %v1396, %v1559
    %v1624 = vadd.f32 %v1397, %v1560
    %v1625 = vadd.f32 %v1398, %v1561
    %v1626 = vadd.f32 %v1399, %v1562
    %v1627 = vadd.f32 %v1400, %v1563
    %v1628 = vadd.f32 %v1401, %v1564
    %v1629 = vadd.f32 %v1402, %v1565
    %v1630 = vadd.f32 %v1403, %v1566
    %v1631 = vadd.f32 %v1404, %v1567
    %v1632 = vadd.f32 %v1405, %v1568
    %v1633 = vadd.f32 %v1406, %v1569
    %s1634 = sld [smem:[#allocation3 + $0x2]]
    %s1635 = scalar_lea.vmem [#allocation4], 512
    %v1636 = vld [vmem:[%s1635] sm:$0xff]
    %v1637 = vld [vmem:[%s1635 + $0x8] sm:$0xff]
    %v1638 = vld [vmem:[%s1635 + $0x10] sm:$0xff]
    %v1639 = vld [vmem:[%s1635 + $0x18] sm:$0xff]
    %v1640 = vld [vmem:[%s1635 + $0x20] sm:$0xff]
    %v1641 = vld [vmem:[%s1635 + $0x28] sm:$0xff]
    %v1642 = vld [vmem:[%s1635 + $0x30] sm:$0xff]
    %v1643 = vld [vmem:[%s1635 + $0x38] sm:$0xff]
    %v1644 = vld [vmem:[%s1635 + $0x40] sm:$0xff]
    %v1645 = vld [vmem:[%s1635 + $0x48] sm:$0xff]
    %v1646 = vld [vmem:[%s1635 + $0x50] sm:$0xff]
    %v1647 = vld [vmem:[%s1635 + $0x58] sm:$0xff]
    %v1648 = vld [vmem:[%s1635 + $0x60] sm:$0xff]
    %v1649 = vld [vmem:[%s1635 + $0x68] sm:$0xff]
    %v1650 = vld [vmem:[%s1635 + $0x70] sm:$0xff]
    %v1651 = vld [vmem:[%s1635 + $0x78] sm:$0xff]
    %v1652 = vld [vmem:[%s1635 + $0x80] sm:$0xff]
    %v1653 = vld [vmem:[%s1635 + $0x88] sm:$0xff]
    %v1654 = vld [vmem:[%s1635 + $0x90] sm:$0xff]
    %v1655 = vld [vmem:[%s1635 + $0x98] sm:$0xff]
    %v1656 = vld [vmem:[%s1635 + $0xa0] sm:$0xff]
    %v1657 = vld [vmem:[%s1635 + $0xa8] sm:$0xff]
    %v1658 = vld [vmem:[%s1635 + $0xb0] sm:$0xff]
    %v1659 = vld [vmem:[%s1635 + $0xb8] sm:$0xff]
    %v1660 = vld [vmem:[%s1635 + $0xc0] sm:$0xff]
    %v1661 = vld [vmem:[%s1635 + $0xc8] sm:$0xff]
    %v1662 = vld [vmem:[%s1635 + $0xd0] sm:$0xff]
    %v1663 = vld [vmem:[%s1635 + $0xd8] sm:$0xff]
    %v1664 = vld [vmem:[%s1635 + $0xe0] sm:$0xff]
    %v1665 = vld [vmem:[%s1635 + $0xe8] sm:$0xff]
    %v1666 = vld [vmem:[%s1635 + $0xf0] sm:$0xff]
    %v1667 = vld [vmem:[%s1635 + $0xf8] sm:$0xff]
    %v1668 = vunpack.c.l.bf16 %v1636
    %v1669 = vunpack.c.h.bf16 %v1636
    %v1670 = vunpack.c.l.bf16 %v1637
    %v1671 = vunpack.c.h.bf16 %v1637
    %v1672 = vunpack.c.l.bf16 %v1638
    %v1673 = vunpack.c.h.bf16 %v1638
    %v1674 = vunpack.c.l.bf16 %v1639
    %v1675 = vunpack.c.h.bf16 %v1639
    %v1676 = vunpack.c.l.bf16 %v1640
    %v1677 = vunpack.c.h.bf16 %v1640
    %v1678 = vunpack.c.l.bf16 %v1641
    %v1679 = vunpack.c.h.bf16 %v1641
    %v1680 = vunpack.c.l.bf16 %v1642
    %v1681 = vunpack.c.h.bf16 %v1642
    %v1682 = vunpack.c.l.bf16 %v1643
    %v1683 = vunpack.c.h.bf16 %v1643
    %v1684 = vunpack.c.l.bf16 %v1644
    %v1685 = vunpack.c.h.bf16 %v1644
    %v1686 = vunpack.c.l.bf16 %v1645
    %v1687 = vunpack.c.h.bf16 %v1645
    %v1688 = vunpack.c.l.bf16 %v1646
    %v1689 = vunpack.c.h.bf16 %v1646
    %v1690 = vunpack.c.l.bf16 %v1647
    %v1691 = vunpack.c.h.bf16 %v1647
    %v1692 = vunpack.c.l.bf16 %v1648
    %v1693 = vunpack.c.h.bf16 %v1648
    %v1694 = vunpack.c.l.bf16 %v1649
    %v1695 = vunpack.c.h.bf16 %v1649
    %v1696 = vunpack.c.l.bf16 %v1650
    %v1697 = vunpack.c.h.bf16 %v1650
    %v1698 = vunpack.c.l.bf16 %v1651
    %v1699 = vunpack.c.h.bf16 %v1651
    %v1700 = vunpack.c.l.bf16 %v1652
    %v1701 = vunpack.c.h.bf16 %v1652
    %v1702 = vunpack.c.l.bf16 %v1653
    %v1703 = vunpack.c.h.bf16 %v1653
    %v1704 = vunpack.c.l.bf16 %v1654
    %v1705 = vunpack.c.h.bf16 %v1654
    %v1706 = vunpack.c.l.bf16 %v1655
    %v1707 = vunpack.c.h.bf16 %v1655
    %v1708 = vunpack.c.l.bf16 %v1656
    %v1709 = vunpack.c.h.bf16 %v1656
    %v1710 = vunpack.c.l.bf16 %v1657
    %v1711 = vunpack.c.h.bf16 %v1657
    %v1712 = vunpack.c.l.bf16 %v1658
    %v1713 = vunpack.c.h.bf16 %v1658
    %v1714 = vunpack.c.l.bf16 %v1659
    %v1715 = vunpack.c.h.bf16 %v1659
    %v1716 = vunpack.c.l.bf16 %v1660
    %v1717 = vunpack.c.h.bf16 %v1660
    %v1718 = vunpack.c.l.bf16 %v1661
    %v1719 = vunpack.c.h.bf16 %v1661
    %v1720 = vunpack.c.l.bf16 %v1662
    %v1721 = vunpack.c.h.bf16 %v1662
    %v1722 = vunpack.c.l.bf16 %v1663
    %v1723 = vunpack.c.h.bf16 %v1663
    %v1724 = vunpack.c.l.bf16 %v1664
    %v1725 = vunpack.c.h.bf16 %v1664
    %v1726 = vunpack.c.l.bf16 %v1665
    %v1727 = vunpack.c.h.bf16 %v1665
    %v1728 = vunpack.c.l.bf16 %v1666
    %v1729 = vunpack.c.h.bf16 %v1666
    %v1730 = vunpack.c.l.bf16 %v1667
    %v1731 = vunpack.c.h.bf16 %v1667
    %v1732 = vstv %s1634
    %v1733 = vmul.f32 %v1732, %v1668
    %v1734 = vmul.f32 %v1732, %v1669
    %v1735 = vmul.f32 %v1732, %v1670
    %v1736 = vmul.f32 %v1732, %v1671
    %v1737 = vmul.f32 %v1732, %v1672
    %v1738 = vmul.f32 %v1732, %v1673
    %v1739 = vmul.f32 %v1732, %v1674
    %v1740 = vmul.f32 %v1732, %v1675
    %v1741 = vmul.f32 %v1732, %v1676
    %v1742 = vmul.f32 %v1732, %v1677
    %v1743 = vmul.f32 %v1732, %v1678
    %v1744 = vmul.f32 %v1732, %v1679
    %v1745 = vmul.f32 %v1732, %v1680
    %v1746 = vmul.f32 %v1732, %v1681
    %v1747 = vmul.f32 %v1732, %v1682
    %v1748 = vmul.f32 %v1732, %v1683
    %v1749 = vmul.f32 %v1732, %v1684
    %v1750 = vmul.f32 %v1732, %v1685
    %v1751 = vmul.f32 %v1732, %v1686
    %v1752 = vmul.f32 %v1732, %v1687
    %v1753 = vmul.f32 %v1732, %v1688
    %v1754 = vmul.f32 %v1732, %v1689
    %v1755 = vmul.f32 %v1732, %v1690
    %v1756 = vmul.f32 %v1732, %v1691
    %v1757 = vmul.f32 %v1732, %v1692
    %v1758 = vmul.f32 %v1732, %v1693
    %v1759 = vmul.f32 %v1732, %v1694
    %v1760 = vmul.f32 %v1732, %v1695
    %v1761 = vmul.f32 %v1732, %v1696
    %v1762 = vmul.f32 %v1732, %v1697
    %v1763 = vmul.f32 %v1732, %v1698
    %v1764 = vmul.f32 %v1732, %v1699
    %v1765 = vmul.f32 %v1732, %v1700
    %v1766 = vmul.f32 %v1732, %v1701
    %v1767 = vmul.f32 %v1732, %v1702
    %v1768 = vmul.f32 %v1732, %v1703
    %v1769 = vmul.f32 %v1732, %v1704
    %v1770 = vmul.f32 %v1732, %v1705
    %v1771 = vmul.f32 %v1732, %v1706
    %v1772 = vmul.f32 %v1732, %v1707
    %v1773 = vmul.f32 %v1732, %v1708
    %v1774 = vmul.f32 %v1732, %v1709
    %v1775 = vmul.f32 %v1732, %v1710
    %v1776 = vmul.f32 %v1732, %v1711
    %v1777 = vmul.f32 %v1732, %v1712
    %v1778 = vmul.f32 %v1732, %v1713
    %v1779 = vmul.f32 %v1732, %v1714
    %v1780 = vmul.f32 %v1732, %v1715
    %v1781 = vmul.f32 %v1732, %v1716
    %v1782 = vmul.f32 %v1732, %v1717
    %v1783 = vmul.f32 %v1732, %v1718
    %v1784 = vmul.f32 %v1732, %v1719
    %v1785 = vmul.f32 %v1732, %v1720
    %v1786 = vmul.f32 %v1732, %v1721
    %v1787 = vmul.f32 %v1732, %v1722
    %v1788 = vmul.f32 %v1732, %v1723
    %v1789 = vmul.f32 %v1732, %v1724
    %v1790 = vmul.f32 %v1732, %v1725
    %v1791 = vmul.f32 %v1732, %v1726
    %v1792 = vmul.f32 %v1732, %v1727
    %v1793 = vmul.f32 %v1732, %v1728
    %v1794 = vmul.f32 %v1732, %v1729
    %v1795 = vmul.f32 %v1732, %v1730
    %v1796 = vmul.f32 %v1732, %v1731
    %v1797 = vadd.f32 %v1570, %v1733
    %v1798 = vadd.f32 %v1571, %v1734
    %v1799 = vadd.f32 %v1572, %v1735
    %v1800 = vadd.f32 %v1573, %v1736
    %v1801 = vadd.f32 %v1574, %v1737
    %v1802 = vadd.f32 %v1575, %v1738
    %v1803 = vadd.f32 %v1576, %v1739
    %v1804 = vadd.f32 %v1577, %v1740
    %v1805 = vadd.f32 %v1578, %v1741
    %v1806 = vadd.f32 %v1579, %v1742
    %v1807 = vadd.f32 %v1580, %v1743
    %v1808 = vadd.f32 %v1581, %v1744
    %v1809 = vadd.f32 %v1582, %v1745
    %v1810 = vadd.f32 %v1583, %v1746
    %v1811 = vadd.f32 %v1584, %v1747
    %v1812 = vadd.f32 %v1585, %v1748
    %v1813 = vadd.f32 %v1586, %v1749
    %v1814 = vadd.f32 %v1587, %v1750
    %v1815 = vadd.f32 %v1588, %v1751
    %v1816 = vadd.f32 %v1589, %v1752
    %v1817 = vadd.f32 %v1590, %v1753
    %v1818 = vadd.f32 %v1591, %v1754
    %v1819 = vadd.f32 %v1592, %v1755
    %v1820 = vadd.f32 %v1593, %v1756
    %v1821 = vadd.f32 %v1594, %v1757
    %v1822 = vadd.f32 %v1595, %v1758
    %v1823 = vadd.f32 %v1596, %v1759
    %v1824 = vadd.f32 %v1597, %v1760
    %v1825 = vadd.f32 %v1598, %v1761
    %v1826 = vadd.f32 %v1599, %v1762
    %v1827 = vadd.f32 %v1600, %v1763
    %v1828 = vadd.f32 %v1601, %v1764
    %v1829 = vadd.f32 %v1602, %v1765
    %v1830 = vadd.f32 %v1603, %v1766
    %v1831 = vadd.f32 %v1604, %v1767
    %v1832 = vadd.f32 %v1605, %v1768
    %v1833 = vadd.f32 %v1606, %v1769
    %v1834 = vadd.f32 %v1607, %v1770
    %v1835 = vadd.f32 %v1608, %v1771
    %v1836 = vadd.f32 %v1609, %v1772
    %v1837 = vadd.f32 %v1610, %v1773
    %v1838 = vadd.f32 %v1611, %v1774
    %v1839 = vadd.f32 %v1612, %v1775
    %v1840 = vadd.f32 %v1613, %v1776
    %v1841 = vadd.f32 %v1614, %v1777
    %v1842 = vadd.f32 %v1615, %v1778
    %v1843 = vadd.f32 %v1616, %v1779
    %v1844 = vadd.f32 %v1617, %v1780
    %v1845 = vadd.f32 %v1618, %v1781
    %v1846 = vadd.f32 %v1619, %v1782
    %v1847 = vadd.f32 %v1620, %v1783
    %v1848 = vadd.f32 %v1621, %v1784
    %v1849 = vadd.f32 %v1622, %v1785
    %v1850 = vadd.f32 %v1623, %v1786
    %v1851 = vadd.f32 %v1624, %v1787
    %v1852 = vadd.f32 %v1625, %v1788
    %v1853 = vadd.f32 %v1626, %v1789
    %v1854 = vadd.f32 %v1627, %v1790
    %v1855 = vadd.f32 %v1628, %v1791
    %v1856 = vadd.f32 %v1629, %v1792
    %v1857 = vadd.f32 %v1630, %v1793
    %v1858 = vadd.f32 %v1631, %v1794
    %v1859 = vadd.f32 %v1632, %v1795
    %v1860 = vadd.f32 %v1633, %v1796
    %s1861 = sld [smem:[#allocation3 + $0x3]]
    %s1862 = scalar_lea.vmem [#allocation4], 768
    %v1863 = vld [vmem:[%s1862] sm:$0xff]
    %v1864 = vld [vmem:[%s1862 + $0x8] sm:$0xff]
    %v1865 = vld [vmem:[%s1862 + $0x10] sm:$0xff]
    %v1866 = vld [vmem:[%s1862 + $0x18] sm:$0xff]
    %v1867 = vld [vmem:[%s1862 + $0x20] sm:$0xff]
    %v1868 = vld [vmem:[%s1862 + $0x28] sm:$0xff]
    %v1869 = vld [vmem:[%s1862 + $0x30] sm:$0xff]
    %v1870 = vld [vmem:[%s1862 + $0x38] sm:$0xff]
    %v1871 = vld [vmem:[%s1862 + $0x40] sm:$0xff]
    %v1872 = vld [vmem:[%s1862 + $0x48] sm:$0xff]
    %v1873 = vld [vmem:[%s1862 + $0x50] sm:$0xff]
    %v1874 = vld [vmem:[%s1862 + $0x58] sm:$0xff]
    %v1875 = vld [vmem:[%s1862 + $0x60] sm:$0xff]
    %v1876 = vld [vmem:[%s1862 + $0x68] sm:$0xff]
    %v1877 = vld [vmem:[%s1862 + $0x70] sm:$0xff]
    %v1878 = vld [vmem:[%s1862 + $0x78] sm:$0xff]
    %v1879 = vld [vmem:[%s1862 + $0x80] sm:$0xff]
    %v1880 = vld [vmem:[%s1862 + $0x88] sm:$0xff]
    %v1881 = vld [vmem:[%s1862 + $0x90] sm:$0xff]
    %v1882 = vld [vmem:[%s1862 + $0x98] sm:$0xff]
    %v1883 = vld [vmem:[%s1862 + $0xa0] sm:$0xff]
    %v1884 = vld [vmem:[%s1862 + $0xa8] sm:$0xff]
    %v1885 = vld [vmem:[%s1862 + $0xb0] sm:$0xff]
    %v1886 = vld [vmem:[%s1862 + $0xb8] sm:$0xff]
    %v1887 = vld [vmem:[%s1862 + $0xc0] sm:$0xff]
    %v1888 = vld [vmem:[%s1862 + $0xc8] sm:$0xff]
    %v1889 = vld [vmem:[%s1862 + $0xd0] sm:$0xff]
    %v1890 = vld [vmem:[%s1862 + $0xd8] sm:$0xff]
    %v1891 = vld [vmem:[%s1862 + $0xe0] sm:$0xff]
    %v1892 = vld [vmem:[%s1862 + $0xe8] sm:$0xff]
    %v1893 = vld [vmem:[%s1862 + $0xf0] sm:$0xff]
    %v1894 = vld [vmem:[%s1862 + $0xf8] sm:$0xff]
    %v1895 = vunpack.c.l.bf16 %v1863
    %v1896 = vunpack.c.h.bf16 %v1863
    %v1897 = vunpack.c.l.bf16 %v1864
    %v1898 = vunpack.c.h.bf16 %v1864
    %v1899 = vunpack.c.l.bf16 %v1865
    %v1900 = vunpack.c.h.bf16 %v1865
    %v1901 = vunpack.c.l.bf16 %v1866
    %v1902 = vunpack.c.h.bf16 %v1866
    %v1903 = vunpack.c.l.bf16 %v1867
    %v1904 = vunpack.c.h.bf16 %v1867
    %v1905 = vunpack.c.l.bf16 %v1868
    %v1906 = vunpack.c.h.bf16 %v1868
    %v1907 = vunpack.c.l.bf16 %v1869
    %v1908 = vunpack.c.h.bf16 %v1869
    %v1909 = vunpack.c.l.bf16 %v1870
    %v1910 = vunpack.c.h.bf16 %v1870
    %v1911 = vunpack.c.l.bf16 %v1871
    %v1912 = vunpack.c.h.bf16 %v1871
    %v1913 = vunpack.c.l.bf16 %v1872
    %v1914 = vunpack.c.h.bf16 %v1872
    %v1915 = vunpack.c.l.bf16 %v1873
    %v1916 = vunpack.c.h.bf16 %v1873
    %v1917 = vunpack.c.l.bf16 %v1874
    %v1918 = vunpack.c.h.bf16 %v1874
    %v1919 = vunpack.c.l.bf16 %v1875
    %v1920 = vunpack.c.h.bf16 %v1875
    %v1921 = vunpack.c.l.bf16 %v1876
    %v1922 = vunpack.c.h.bf16 %v1876
    %v1923 = vunpack.c.l.bf16 %v1877
    %v1924 = vunpack.c.h.bf16 %v1877
    %v1925 = vunpack.c.l.bf16 %v1878
    %v1926 = vunpack.c.h.bf16 %v1878
    %v1927 = vunpack.c.l.bf16 %v1879
    %v1928 = vunpack.c.h.bf16 %v1879
    %v1929 = vunpack.c.l.bf16 %v1880
    %v1930 = vunpack.c.h.bf16 %v1880
    %v1931 = vunpack.c.l.bf16 %v1881
    %v1932 = vunpack.c.h.bf16 %v1881
    %v1933 = vunpack.c.l.bf16 %v1882
    %v1934 = vunpack.c.h.bf16 %v1882
    %v1935 = vunpack.c.l.bf16 %v1883
    %v1936 = vunpack.c.h.bf16 %v1883
    %v1937 = vunpack.c.l.bf16 %v1884
    %v1938 = vunpack.c.h.bf16 %v1884
    %v1939 = vunpack.c.l.bf16 %v1885
    %v1940 = vunpack.c.h.bf16 %v1885
    %v1941 = vunpack.c.l.bf16 %v1886
    %v1942 = vunpack.c.h.bf16 %v1886
    %v1943 = vunpack.c.l.bf16 %v1887
    %v1944 = vunpack.c.h.bf16 %v1887
    %v1945 = vunpack.c.l.bf16 %v1888
    %v1946 = vunpack.c.h.bf16 %v1888
    %v1947 = vunpack.c.l.bf16 %v1889
    %v1948 = vunpack.c.h.bf16 %v1889
    %v1949 = vunpack.c.l.bf16 %v1890
    %v1950 = vunpack.c.h.bf16 %v1890
    %v1951 = vunpack.c.l.bf16 %v1891
    %v1952 = vunpack.c.h.bf16 %v1891
    %v1953 = vunpack.c.l.bf16 %v1892
    %v1954 = vunpack.c.h.bf16 %v1892
    %v1955 = vunpack.c.l.bf16 %v1893
    %v1956 = vunpack.c.h.bf16 %v1893
    %v1957 = vunpack.c.l.bf16 %v1894
    %v1958 = vunpack.c.h.bf16 %v1894
    %v1959 = vstv %s1861
    %v1960 = vmul.f32 %v1959, %v1895
    %v1961 = vmul.f32 %v1959, %v1896
    %v1962 = vmul.f32 %v1959, %v1897
    %v1963 = vmul.f32 %v1959, %v1898
    %v1964 = vmul.f32 %v1959, %v1899
    %v1965 = vmul.f32 %v1959, %v1900
    %v1966 = vmul.f32 %v1959, %v1901
    %v1967 = vmul.f32 %v1959, %v1902
    %v1968 = vmul.f32 %v1959, %v1903
    %v1969 = vmul.f32 %v1959, %v1904
    %v1970 = vmul.f32 %v1959, %v1905
    %v1971 = vmul.f32 %v1959, %v1906
    %v1972 = vmul.f32 %v1959, %v1907
    %v1973 = vmul.f32 %v1959, %v1908
    %v1974 = vmul.f32 %v1959, %v1909
    %v1975 = vmul.f32 %v1959, %v1910
    %v1976 = vmul.f32 %v1959, %v1911
    %v1977 = vmul.f32 %v1959, %v1912
    %v1978 = vmul.f32 %v1959, %v1913
    %v1979 = vmul.f32 %v1959, %v1914
    %v1980 = vmul.f32 %v1959, %v1915
    %v1981 = vmul.f32 %v1959, %v1916
    %v1982 = vmul.f32 %v1959, %v1917
    %v1983 = vmul.f32 %v1959, %v1918
    %v1984 = vmul.f32 %v1959, %v1919
    %v1985 = vmul.f32 %v1959, %v1920
    %v1986 = vmul.f32 %v1959, %v1921
    %v1987 = vmul.f32 %v1959, %v1922
    %v1988 = vmul.f32 %v1959, %v1923
    %v1989 = vmul.f32 %v1959, %v1924
    %v1990 = vmul.f32 %v1959, %v1925
    %v1991 = vmul.f32 %v1959, %v1926
    %v1992 = vmul.f32 %v1959, %v1927
    %v1993 = vmul.f32 %v1959, %v1928
    %v1994 = vmul.f32 %v1959, %v1929
    %v1995 = vmul.f32 %v1959, %v1930
    %v1996 = vmul.f32 %v1959, %v1931
    %v1997 = vmul.f32 %v1959, %v1932
    %v1998 = vmul.f32 %v1959, %v1933
    %v1999 = vmul.f32 %v1959, %v1934
    %v2000 = vmul.f32 %v1959, %v1935
    %v2001 = vmul.f32 %v1959, %v1936
    %v2002 = vmul.f32 %v1959, %v1937
    %v2003 = vmul.f32 %v1959, %v1938
    %v2004 = vmul.f32 %v1959, %v1939
    %v2005 = vmul.f32 %v1959, %v1940
    %v2006 = vmul.f32 %v1959, %v1941
    %v2007 = vmul.f32 %v1959, %v1942
    %v2008 = vmul.f32 %v1959, %v1943
    %v2009 = vmul.f32 %v1959, %v1944
    %v2010 = vmul.f32 %v1959, %v1945
    %v2011 = vmul.f32 %v1959, %v1946
    %v2012 = vmul.f32 %v1959, %v1947
    %v2013 = vmul.f32 %v1959, %v1948
    %v2014 = vmul.f32 %v1959, %v1949
    %v2015 = vmul.f32 %v1959, %v1950
    %v2016 = vmul.f32 %v1959, %v1951
    %v2017 = vmul.f32 %v1959, %v1952
    %v2018 = vmul.f32 %v1959, %v1953
    %v2019 = vmul.f32 %v1959, %v1954
    %v2020 = vmul.f32 %v1959, %v1955
    %v2021 = vmul.f32 %v1959, %v1956
    %v2022 = vmul.f32 %v1959, %v1957
    %v2023 = vmul.f32 %v1959, %v1958
    %v2024 = vadd.f32 %v1797, %v1960
    %v2025 = vadd.f32 %v1798, %v1961
    %v2026 = vadd.f32 %v1799, %v1962
    %v2027 = vadd.f32 %v1800, %v1963
    %v2028 = vadd.f32 %v1801, %v1964
    %v2029 = vadd.f32 %v1802, %v1965
    %v2030 = vadd.f32 %v1803, %v1966
    %v2031 = vadd.f32 %v1804, %v1967
    %v2032 = vadd.f32 %v1805, %v1968
    %v2033 = vadd.f32 %v1806, %v1969
    %v2034 = vadd.f32 %v1807, %v1970
    %v2035 = vadd.f32 %v1808, %v1971
    %v2036 = vadd.f32 %v1809, %v1972
    %v2037 = vadd.f32 %v1810, %v1973
    %v2038 = vadd.f32 %v1811, %v1974
    %v2039 = vadd.f32 %v1812, %v1975
    %v2040 = vadd.f32 %v1813, %v1976
    %v2041 = vadd.f32 %v1814, %v1977
    %v2042 = vadd.f32 %v1815, %v1978
    %v2043 = vadd.f32 %v1816, %v1979
    %v2044 = vadd.f32 %v1817, %v1980
    %v2045 = vadd.f32 %v1818, %v1981
    %v2046 = vadd.f32 %v1819, %v1982
    %v2047 = vadd.f32 %v1820, %v1983
    %v2048 = vadd.f32 %v1821, %v1984
    %v2049 = vadd.f32 %v1822, %v1985
    %v2050 = vadd.f32 %v1823, %v1986
    %v2051 = vadd.f32 %v1824, %v1987
    %v2052 = vadd.f32 %v1825, %v1988
    %v2053 = vadd.f32 %v1826, %v1989
    %v2054 = vadd.f32 %v1827, %v1990
    %v2055 = vadd.f32 %v1828, %v1991
    %v2056 = vadd.f32 %v1829, %v1992
    %v2057 = vadd.f32 %v1830, %v1993
    %v2058 = vadd.f32 %v1831, %v1994
    %v2059 = vadd.f32 %v1832, %v1995
    %v2060 = vadd.f32 %v1833, %v1996
    %v2061 = vadd.f32 %v1834, %v1997
    %v2062 = vadd.f32 %v1835, %v1998
    %v2063 = vadd.f32 %v1836, %v1999
    %v2064 = vadd.f32 %v1837, %v2000
    %v2065 = vadd.f32 %v1838, %v2001
    %v2066 = vadd.f32 %v1839, %v2002
    %v2067 = vadd.f32 %v1840, %v2003
    %v2068 = vadd.f32 %v1841, %v2004
    %v2069 = vadd.f32 %v1842, %v2005
    %v2070 = vadd.f32 %v1843, %v2006
    %v2071 = vadd.f32 %v1844, %v2007
    %v2072 = vadd.f32 %v1845, %v2008
    %v2073 = vadd.f32 %v1846, %v2009
    %v2074 = vadd.f32 %v1847, %v2010
    %v2075 = vadd.f32 %v1848, %v2011
    %v2076 = vadd.f32 %v1849, %v2012
    %v2077 = vadd.f32 %v1850, %v2013
    %v2078 = vadd.f32 %v1851, %v2014
    %v2079 = vadd.f32 %v1852, %v2015
    %v2080 = vadd.f32 %v1853, %v2016
    %v2081 = vadd.f32 %v1854, %v2017
    %v2082 = vadd.f32 %v1855, %v2018
    %v2083 = vadd.f32 %v1856, %v2019
    %v2084 = vadd.f32 %v1857, %v2020
    %v2085 = vadd.f32 %v1858, %v2021
    %v2086 = vadd.f32 %v1859, %v2022
    %v2087 = vadd.f32 %v1860, %v2023
    %s2088 = sld [smem:[#allocation3 + $0x4]]
    %s2089 = scalar_lea.vmem [#allocation4], 1024
    %v2090 = vld [vmem:[%s2089] sm:$0xff]
    %v2091 = vld [vmem:[%s2089 + $0x8] sm:$0xff]
    %v2092 = vld [vmem:[%s2089 + $0x10] sm:$0xff]
    %v2093 = vld [vmem:[%s2089 + $0x18] sm:$0xff]
    %v2094 = vld [vmem:[%s2089 + $0x20] sm:$0xff]
    %v2095 = vld [vmem:[%s2089 + $0x28] sm:$0xff]
    %v2096 = vld [vmem:[%s2089 + $0x30] sm:$0xff]
    %v2097 = vld [vmem:[%s2089 + $0x38] sm:$0xff]
    %v2098 = vld [vmem:[%s2089 + $0x40] sm:$0xff]
    %v2099 = vld [vmem:[%s2089 + $0x48] sm:$0xff]
    %v2100 = vld [vmem:[%s2089 + $0x50] sm:$0xff]
    %v2101 = vld [vmem:[%s2089 + $0x58] sm:$0xff]
    %v2102 = vld [vmem:[%s2089 + $0x60] sm:$0xff]
    %v2103 = vld [vmem:[%s2089 + $0x68] sm:$0xff]
    %v2104 = vld [vmem:[%s2089 + $0x70] sm:$0xff]
    %v2105 = vld [vmem:[%s2089 + $0x78] sm:$0xff]
    %v2106 = vld [vmem:[%s2089 + $0x80] sm:$0xff]
    %v2107 = vld [vmem:[%s2089 + $0x88] sm:$0xff]
    %v2108 = vld [vmem:[%s2089 + $0x90] sm:$0xff]
    %v2109 = vld [vmem:[%s2089 + $0x98] sm:$0xff]
    %v2110 = vld [vmem:[%s2089 + $0xa0] sm:$0xff]
    %v2111 = vld [vmem:[%s2089 + $0xa8] sm:$0xff]
    %v2112 = vld [vmem:[%s2089 + $0xb0] sm:$0xff]
    %v2113 = vld [vmem:[%s2089 + $0xb8] sm:$0xff]
    %v2114 = vld [vmem:[%s2089 + $0xc0] sm:$0xff]
    %v2115 = vld [vmem:[%s2089 + $0xc8] sm:$0xff]
    %v2116 = vld [vmem:[%s2089 + $0xd0] sm:$0xff]
    %v2117 = vld [vmem:[%s2089 + $0xd8] sm:$0xff]
    %v2118 = vld [vmem:[%s2089 + $0xe0] sm:$0xff]
    %v2119 = vld [vmem:[%s2089 + $0xe8] sm:$0xff]
    %v2120 = vld [vmem:[%s2089 + $0xf0] sm:$0xff]
    %v2121 = vld [vmem:[%s2089 + $0xf8] sm:$0xff]
    %v2122 = vunpack.c.l.bf16 %v2090
    %v2123 = vunpack.c.h.bf16 %v2090
    %v2124 = vunpack.c.l.bf16 %v2091
    %v2125 = vunpack.c.h.bf16 %v2091
    %v2126 = vunpack.c.l.bf16 %v2092
    %v2127 = vunpack.c.h.bf16 %v2092
    %v2128 = vunpack.c.l.bf16 %v2093
    %v2129 = vunpack.c.h.bf16 %v2093
    %v2130 = vunpack.c.l.bf16 %v2094
    %v2131 = vunpack.c.h.bf16 %v2094
    %v2132 = vunpack.c.l.bf16 %v2095
    %v2133 = vunpack.c.h.bf16 %v2095
    %v2134 = vunpack.c.l.bf16 %v2096
    %v2135 = vunpack.c.h.bf16 %v2096
    %v2136 = vunpack.c.l.bf16 %v2097
    %v2137 = vunpack.c.h.bf16 %v2097
    %v2138 = vunpack.c.l.bf16 %v2098
    %v2139 = vunpack.c.h.bf16 %v2098
    %v2140 = vunpack.c.l.bf16 %v2099
    %v2141 = vunpack.c.h.bf16 %v2099
    %v2142 = vunpack.c.l.bf16 %v2100
    %v2143 = vunpack.c.h.bf16 %v2100
    %v2144 = vunpack.c.l.bf16 %v2101
    %v2145 = vunpack.c.h.bf16 %v2101
    %v2146 = vunpack.c.l.bf16 %v2102
    %v2147 = vunpack.c.h.bf16 %v2102
    %v2148 = vunpack.c.l.bf16 %v2103
    %v2149 = vunpack.c.h.bf16 %v2103
    %v2150 = vunpack.c.l.bf16 %v2104
    %v2151 = vunpack.c.h.bf16 %v2104
    %v2152 = vunpack.c.l.bf16 %v2105
    %v2153 = vunpack.c.h.bf16 %v2105
    %v2154 = vunpack.c.l.bf16 %v2106
    %v2155 = vunpack.c.h.bf16 %v2106
    %v2156 = vunpack.c.l.bf16 %v2107
    %v2157 = vunpack.c.h.bf16 %v2107
    %v2158 = vunpack.c.l.bf16 %v2108
    %v2159 = vunpack.c.h.bf16 %v2108
    %v2160 = vunpack.c.l.bf16 %v2109
    %v2161 = vunpack.c.h.bf16 %v2109
    %v2162 = vunpack.c.l.bf16 %v2110
    %v2163 = vunpack.c.h.bf16 %v2110
    %v2164 = vunpack.c.l.bf16 %v2111
    %v2165 = vunpack.c.h.bf16 %v2111
    %v2166 = vunpack.c.l.bf16 %v2112
    %v2167 = vunpack.c.h.bf16 %v2112
    %v2168 = vunpack.c.l.bf16 %v2113
    %v2169 = vunpack.c.h.bf16 %v2113
    %v2170 = vunpack.c.l.bf16 %v2114
    %v2171 = vunpack.c.h.bf16 %v2114
    %v2172 = vunpack.c.l.bf16 %v2115
    %v2173 = vunpack.c.h.bf16 %v2115
    %v2174 = vunpack.c.l.bf16 %v2116
    %v2175 = vunpack.c.h.bf16 %v2116
    %v2176 = vunpack.c.l.bf16 %v2117
    %v2177 = vunpack.c.h.bf16 %v2117
    %v2178 = vunpack.c.l.bf16 %v2118
    %v2179 = vunpack.c.h.bf16 %v2118
    %v2180 = vunpack.c.l.bf16 %v2119
    %v2181 = vunpack.c.h.bf16 %v2119
    %v2182 = vunpack.c.l.bf16 %v2120
    %v2183 = vunpack.c.h.bf16 %v2120
    %v2184 = vunpack.c.l.bf16 %v2121
    %v2185 = vunpack.c.h.bf16 %v2121
    %v2186 = vstv %s2088
    %v2187 = vmul.f32 %v2186, %v2122
    %v2188 = vmul.f32 %v2186, %v2123
    %v2189 = vmul.f32 %v2186, %v2124
    %v2190 = vmul.f32 %v2186, %v2125
    %v2191 = vmul.f32 %v2186, %v2126
    %v2192 = vmul.f32 %v2186, %v2127
    %v2193 = vmul.f32 %v2186, %v2128
    %v2194 = vmul.f32 %v2186, %v2129
    %v2195 = vmul.f32 %v2186, %v2130
    %v2196 = vmul.f32 %v2186, %v2131
    %v2197 = vmul.f32 %v2186, %v2132
    %v2198 = vmul.f32 %v2186, %v2133
    %v2199 = vmul.f32 %v2186, %v2134
    %v2200 = vmul.f32 %v2186, %v2135
    %v2201 = vmul.f32 %v2186, %v2136
    %v2202 = vmul.f32 %v2186, %v2137
    %v2203 = vmul.f32 %v2186, %v2138
    %v2204 = vmul.f32 %v2186, %v2139
    %v2205 = vmul.f32 %v2186, %v2140
    %v2206 = vmul.f32 %v2186, %v2141
    %v2207 = vmul.f32 %v2186, %v2142
    %v2208 = vmul.f32 %v2186, %v2143
    %v2209 = vmul.f32 %v2186, %v2144
    %v2210 = vmul.f32 %v2186, %v2145
    %v2211 = vmul.f32 %v2186, %v2146
    %v2212 = vmul.f32 %v2186, %v2147
    %v2213 = vmul.f32 %v2186, %v2148
    %v2214 = vmul.f32 %v2186, %v2149
    %v2215 = vmul.f32 %v2186, %v2150
    %v2216 = vmul.f32 %v2186, %v2151
    %v2217 = vmul.f32 %v2186, %v2152
    %v2218 = vmul.f32 %v2186, %v2153
    %v2219 = vmul.f32 %v2186, %v2154
    %v2220 = vmul.f32 %v2186, %v2155
    %v2221 = vmul.f32 %v2186, %v2156
    %v2222 = vmul.f32 %v2186, %v2157
    %v2223 = vmul.f32 %v2186, %v2158
    %v2224 = vmul.f32 %v2186, %v2159
    %v2225 = vmul.f32 %v2186, %v2160
    %v2226 = vmul.f32 %v2186, %v2161
    %v2227 = vmul.f32 %v2186, %v2162
    %v2228 = vmul.f32 %v2186, %v2163
    %v2229 = vmul.f32 %v2186, %v2164
    %v2230 = vmul.f32 %v2186, %v2165
    %v2231 = vmul.f32 %v2186, %v2166
    %v2232 = vmul.f32 %v2186, %v2167
    %v2233 = vmul.f32 %v2186, %v2168
    %v2234 = vmul.f32 %v2186, %v2169
    %v2235 = vmul.f32 %v2186, %v2170
    %v2236 = vmul.f32 %v2186, %v2171
    %v2237 = vmul.f32 %v2186, %v2172
    %v2238 = vmul.f32 %v2186, %v2173
    %v2239 = vmul.f32 %v2186, %v2174
    %v2240 = vmul.f32 %v2186, %v2175
    %v2241 = vmul.f32 %v2186, %v2176
    %v2242 = vmul.f32 %v2186, %v2177
    %v2243 = vmul.f32 %v2186, %v2178
    %v2244 = vmul.f32 %v2186, %v2179
    %v2245 = vmul.f32 %v2186, %v2180
    %v2246 = vmul.f32 %v2186, %v2181
    %v2247 = vmul.f32 %v2186, %v2182
    %v2248 = vmul.f32 %v2186, %v2183
    %v2249 = vmul.f32 %v2186, %v2184
    %v2250 = vmul.f32 %v2186, %v2185
    %v2251 = vadd.f32 %v2024, %v2187
    %v2252 = vadd.f32 %v2025, %v2188
    %v2253 = vadd.f32 %v2026, %v2189
    %v2254 = vadd.f32 %v2027, %v2190
    %v2255 = vadd.f32 %v2028, %v2191
    %v2256 = vadd.f32 %v2029, %v2192
    %v2257 = vadd.f32 %v2030, %v2193
    %v2258 = vadd.f32 %v2031, %v2194
    %v2259 = vadd.f32 %v2032, %v2195
    %v2260 = vadd.f32 %v2033, %v2196
    %v2261 = vadd.f32 %v2034, %v2197
    %v2262 = vadd.f32 %v2035, %v2198
    %v2263 = vadd.f32 %v2036, %v2199
    %v2264 = vadd.f32 %v2037, %v2200
    %v2265 = vadd.f32 %v2038, %v2201
    %v2266 = vadd.f32 %v2039, %v2202
    %v2267 = vadd.f32 %v2040, %v2203
    %v2268 = vadd.f32 %v2041, %v2204
    %v2269 = vadd.f32 %v2042, %v2205
    %v2270 = vadd.f32 %v2043, %v2206
    %v2271 = vadd.f32 %v2044, %v2207
    %v2272 = vadd.f32 %v2045, %v2208
    %v2273 = vadd.f32 %v2046, %v2209
    %v2274 = vadd.f32 %v2047, %v2210
    %v2275 = vadd.f32 %v2048, %v2211
    %v2276 = vadd.f32 %v2049, %v2212
    %v2277 = vadd.f32 %v2050, %v2213
    %v2278 = vadd.f32 %v2051, %v2214
    %v2279 = vadd.f32 %v2052, %v2215
    %v2280 = vadd.f32 %v2053, %v2216
    %v2281 = vadd.f32 %v2054, %v2217
    %v2282 = vadd.f32 %v2055, %v2218
    %v2283 = vadd.f32 %v2056, %v2219
    %v2284 = vadd.f32 %v2057, %v2220
    %v2285 = vadd.f32 %v2058, %v2221
    %v2286 = vadd.f32 %v2059, %v2222
    %v2287 = vadd.f32 %v2060, %v2223
    %v2288 = vadd.f32 %v2061, %v2224
    %v2289 = vadd.f32 %v2062, %v2225
    %v2290 = vadd.f32 %v2063, %v2226
    %v2291 = vadd.f32 %v2064, %v2227
    %v2292 = vadd.f32 %v2065, %v2228
    %v2293 = vadd.f32 %v2066, %v2229
    %v2294 = vadd.f32 %v2067, %v2230
    %v2295 = vadd.f32 %v2068, %v2231
    %v2296 = vadd.f32 %v2069, %v2232
    %v2297 = vadd.f32 %v2070, %v2233
    %v2298 = vadd.f32 %v2071, %v2234
    %v2299 = vadd.f32 %v2072, %v2235
    %v2300 = vadd.f32 %v2073, %v2236
    %v2301 = vadd.f32 %v2074, %v2237
    %v2302 = vadd.f32 %v2075, %v2238
    %v2303 = vadd.f32 %v2076, %v2239
    %v2304 = vadd.f32 %v2077, %v2240
    %v2305 = vadd.f32 %v2078, %v2241
    %v2306 = vadd.f32 %v2079, %v2242
    %v2307 = vadd.f32 %v2080, %v2243
    %v2308 = vadd.f32 %v2081, %v2244
    %v2309 = vadd.f32 %v2082, %v2245
    %v2310 = vadd.f32 %v2083, %v2246
    %v2311 = vadd.f32 %v2084, %v2247
    %v2312 = vadd.f32 %v2085, %v2248
    %v2313 = vadd.f32 %v2086, %v2249
    %v2314 = vadd.f32 %v2087, %v2250
    %v2315 = vld [vmem:[%s2] sm:$0xff]
    %v2316 = vld [vmem:[%s2 + $0x8] sm:$0xff]
    %v2317 = vld [vmem:[%s2 + $0x10] sm:$0xff]
    %v2318 = vld [vmem:[%s2 + $0x18] sm:$0xff]
    %v2319 = vld [vmem:[%s2 + $0x20] sm:$0xff]
    %v2320 = vld [vmem:[%s2 + $0x28] sm:$0xff]
    %v2321 = vld [vmem:[%s2 + $0x30] sm:$0xff]
    %v2322 = vld [vmem:[%s2 + $0x38] sm:$0xff]
    %v2323 = vld [vmem:[%s2 + $0x40] sm:$0xff]
    %v2324 = vld [vmem:[%s2 + $0x48] sm:$0xff]
    %v2325 = vld [vmem:[%s2 + $0x50] sm:$0xff]
    %v2326 = vld [vmem:[%s2 + $0x58] sm:$0xff]
    %v2327 = vld [vmem:[%s2 + $0x60] sm:$0xff]
    %v2328 = vld [vmem:[%s2 + $0x68] sm:$0xff]
    %v2329 = vld [vmem:[%s2 + $0x70] sm:$0xff]
    %v2330 = vld [vmem:[%s2 + $0x78] sm:$0xff]
    %v2331 = vunpack.c.0.s8 %v2315
    %v2332 = vunpack.c.0.s8 %v2316
    %v2333 = vunpack.c.1.s8 %v2315
    %v2334 = vunpack.c.1.s8 %v2316
    %v2335 = vunpack.c.2.s8 %v2315
    %v2336 = vunpack.c.2.s8 %v2316
    %v2337 = vunpack.c.3.s8 %v2315
    %v2338 = vunpack.c.3.s8 %v2316
    %v2339 = vunpack.c.0.s8 %v2317
    %v2340 = vunpack.c.0.s8 %v2318
    %v2341 = vunpack.c.1.s8 %v2317
    %v2342 = vunpack.c.1.s8 %v2318
    %v2343 = vunpack.c.2.s8 %v2317
    %v2344 = vunpack.c.2.s8 %v2318
    %v2345 = vunpack.c.3.s8 %v2317
    %v2346 = vunpack.c.3.s8 %v2318
    %v2347 = vunpack.c.0.s8 %v2319
    %v2348 = vunpack.c.0.s8 %v2320
    %v2349 = vunpack.c.1.s8 %v2319
    %v2350 = vunpack.c.1.s8 %v2320
    %v2351 = vunpack.c.2.s8 %v2319
    %v2352 = vunpack.c.2.s8 %v2320
    %v2353 = vunpack.c.3.s8 %v2319
    %v2354 = vunpack.c.3.s8 %v2320
    %v2355 = vunpack.c.0.s8 %v2321
    %v2356 = vunpack.c.0.s8 %v2322
    %v2357 = vunpack.c.1.s8 %v2321
    %v2358 = vunpack.c.1.s8 %v2322
    %v2359 = vunpack.c.2.s8 %v2321
    %v2360 = vunpack.c.2.s8 %v2322
    %v2361 = vunpack.c.3.s8 %v2321
    %v2362 = vunpack.c.3.s8 %v2322
    %v2363 = vunpack.c.0.s8 %v2323
    %v2364 = vunpack.c.0.s8 %v2324
    %v2365 = vunpack.c.1.s8 %v2323
    %v2366 = vunpack.c.1.s8 %v2324
    %v2367 = vunpack.c.2.s8 %v2323
    %v2368 = vunpack.c.2.s8 %v2324
    %v2369 = vunpack.c.3.s8 %v2323
    %v2370 = vunpack.c.3.s8 %v2324
    %v2371 = vunpack.c.0.s8 %v2325
    %v2372 = vunpack.c.0.s8 %v2326
    %v2373 = vunpack.c.1.s8 %v2325
    %v2374 = vunpack.c.1.s8 %v2326
    %v2375 = vunpack.c.2.s8 %v2325
    %v2376 = vunpack.c.2.s8 %v2326
    %v2377 = vunpack.c.3.s8 %v2325
    %v2378 = vunpack.c.3.s8 %v2326
    %v2379 = vunpack.c.0.s8 %v2327
    %v2380 = vunpack.c.0.s8 %v2328
    %v2381 = vunpack.c.1.s8 %v2327
    %v2382 = vunpack.c.1.s8 %v2328
    %v2383 = vunpack.c.2.s8 %v2327
    %v2384 = vunpack.c.2.s8 %v2328
    %v2385 = vunpack.c.3.s8 %v2327
    %v2386 = vunpack.c.3.s8 %v2328
    %v2387 = vunpack.c.0.s8 %v2329
    %v2388 = vunpack.c.0.s8 %v2330
    %v2389 = vunpack.c.1.s8 %v2329
    %v2390 = vunpack.c.1.s8 %v2330
    %v2391 = vunpack.c.2.s8 %v2329
    %v2392 = vunpack.c.2.s8 %v2330
    %v2393 = vunpack.c.3.s8 %v2329
    %v2394 = vunpack.c.3.s8 %v2330
    %v2395 = vcvt.s32.f32 %v2331
    %v2396 = vcvt.s32.f32 %v2332
    %v2397 = vcvt.s32.f32 %v2333
    %v2398 = vcvt.s32.f32 %v2334
    %v2399 = vcvt.s32.f32 %v2335
    %v2400 = vcvt.s32.f32 %v2336
    %v2401 = vcvt.s32.f32 %v2337
    %v2402 = vcvt.s32.f32 %v2338
    %v2403 = vcvt.s32.f32 %v2339
    %v2404 = vcvt.s32.f32 %v2340
    %v2405 = vcvt.s32.f32 %v2341
    %v2406 = vcvt.s32.f32 %v2342
    %v2407 = vcvt.s32.f32 %v2343
    %v2408 = vcvt.s32.f32 %v2344
    %v2409 = vcvt.s32.f32 %v2345
    %v2410 = vcvt.s32.f32 %v2346
    %v2411 = vcvt.s32.f32 %v2347
    %v2412 = vcvt.s32.f32 %v2348
    %v2413 = vcvt.s32.f32 %v2349
    %v2414 = vcvt.s32.f32 %v2350
    %v2415 = vcvt.s32.f32 %v2351
    %v2416 = vcvt.s32.f32 %v2352
    %v2417 = vcvt.s32.f32 %v2353
    %v2418 = vcvt.s32.f32 %v2354
    %v2419 = vcvt.s32.f32 %v2355
    %v2420 = vcvt.s32.f32 %v2356
    %v2421 = vcvt.s32.f32 %v2357
    %v2422 = vcvt.s32.f32 %v2358
    %v2423 = vcvt.s32.f32 %v2359
    %v2424 = vcvt.s32.f32 %v2360
    %v2425 = vcvt.s32.f32 %v2361
    %v2426 = vcvt.s32.f32 %v2362
    %v2427 = vcvt.s32.f32 %v2363
    %v2428 = vcvt.s32.f32 %v2364
    %v2429 = vcvt.s32.f32 %v2365
    %v2430 = vcvt.s32.f32 %v2366
    %v2431 = vcvt.s32.f32 %v2367
    %v2432 = vcvt.s32.f32 %v2368
    %v2433 = vcvt.s32.f32 %v2369
    %v2434 = vcvt.s32.f32 %v2370
    %v2435 = vcvt.s32.f32 %v2371
    %v2436 = vcvt.s32.f32 %v2372
    %v2437 = vcvt.s32.f32 %v2373
    %v2438 = vcvt.s32.f32 %v2374
    %v2439 = vcvt.s32.f32 %v2375
    %v2440 = vcvt.s32.f32 %v2376
    %v2441 = vcvt.s32.f32 %v2377
    %v2442 = vcvt.s32.f32 %v2378
    %v2443 = vcvt.s32.f32 %v2379
    %v2444 = vcvt.s32.f32 %v2380
    %v2445 = vcvt.s32.f32 %v2381
    %v2446 = vcvt.s32.f32 %v2382
    %v2447 = vcvt.s32.f32 %v2383
    %v2448 = vcvt.s32.f32 %v2384
    %v2449 = vcvt.s32.f32 %v2385
    %v2450 = vcvt.s32.f32 %v2386
    %v2451 = vcvt.s32.f32 %v2387
    %v2452 = vcvt.s32.f32 %v2388
    %v2453 = vcvt.s32.f32 %v2389
    %v2454 = vcvt.s32.f32 %v2390
    %v2455 = vcvt.s32.f32 %v2391
    %v2456 = vcvt.s32.f32 %v2392
    %v2457 = vcvt.s32.f32 %v2393
    %v2458 = vcvt.s32.f32 %v2394
    %v2459 = vld [vmem:[%s5] sm:$0xff]
    %v2460 = vmul.f32 %v2251, %v1053
    %v2461 = vmul.f32 %v2252, %v1054
    %v2462 = vmul.f32 %v2253, %v1055
    %v2463 = vmul.f32 %v2254, %v1056
    %v2464 = vmul.f32 %v2255, %v1057
    %v2465 = vmul.f32 %v2256, %v1058
    %v2466 = vmul.f32 %v2257, %v1059
    %v2467 = vmul.f32 %v2258, %v1060
    %v2468 = vmul.f32 %v2259, %v1061
    %v2469 = vmul.f32 %v2260, %v1062
    %v2470 = vmul.f32 %v2261, %v1063
    %v2471 = vmul.f32 %v2262, %v1064
    %v2472 = vmul.f32 %v2263, %v1065
    %v2473 = vmul.f32 %v2264, %v1066
    %v2474 = vmul.f32 %v2265, %v1067
    %v2475 = vmul.f32 %v2266, %v1068
    %v2476 = vmul.f32 %v2267, %v1069
    %v2477 = vmul.f32 %v2268, %v1070
    %v2478 = vmul.f32 %v2269, %v1071
    %v2479 = vmul.f32 %v2270, %v1072
    %v2480 = vmul.f32 %v2271, %v1073
    %v2481 = vmul.f32 %v2272, %v1074
    %v2482 = vmul.f32 %v2273, %v1075
    %v2483 = vmul.f32 %v2274, %v1076
    %v2484 = vmul.f32 %v2275, %v1077
    %v2485 = vmul.f32 %v2276, %v1078
    %v2486 = vmul.f32 %v2277, %v1079
    %v2487 = vmul.f32 %v2278, %v1080
    %v2488 = vmul.f32 %v2279, %v1081
    %v2489 = vmul.f32 %v2280, %v1082
    %v2490 = vmul.f32 %v2281, %v1083
    %v2491 = vmul.f32 %v2282, %v1084
    %v2492 = vmul.f32 %v2283, %v1085
    %v2493 = vmul.f32 %v2284, %v1086
    %v2494 = vmul.f32 %v2285, %v1087
    %v2495 = vmul.f32 %v2286, %v1088
    %v2496 = vmul.f32 %v2287, %v1089
    %v2497 = vmul.f32 %v2288, %v1090
    %v2498 = vmul.f32 %v2289, %v1091
    %v2499 = vmul.f32 %v2290, %v1092
    %v2500 = vmul.f32 %v2291, %v1093
    %v2501 = vmul.f32 %v2292, %v1094
    %v2502 = vmul.f32 %v2293, %v1095
    %v2503 = vmul.f32 %v2294, %v1096
    %v2504 = vmul.f32 %v2295, %v1097
    %v2505 = vmul.f32 %v2296, %v1098
    %v2506 = vmul.f32 %v2297, %v1099
    %v2507 = vmul.f32 %v2298, %v1100
    %v2508 = vmul.f32 %v2299, %v1101
    %v2509 = vmul.f32 %v2300, %v1102
    %v2510 = vmul.f32 %v2301, %v1103
    %v2511 = vmul.f32 %v2302, %v1104
    %v2512 = vmul.f32 %v2303, %v1105
    %v2513 = vmul.f32 %v2304, %v1106
    %v2514 = vmul.f32 %v2305, %v1107
    %v2515 = vmul.f32 %v2306, %v1108
    %v2516 = vmul.f32 %v2307, %v1109
    %v2517 = vmul.f32 %v2308, %v1110
    %v2518 = vmul.f32 %v2309, %v1111
    %v2519 = vmul.f32 %v2310, %v1112
    %v2520 = vmul.f32 %v2311, %v1113
    %v2521 = vmul.f32 %v2312, %v1114
    %v2522 = vmul.f32 %v2313, %v1115
    %v2523 = vmul.f32 %v2314, %v1116
    %v2524 = vadd.f32 %v2460, %v2461
    %v2525 = vadd.f32 %v2524, %v2462
    %v2526 = vadd.f32 %v2525, %v2463
    %v2527 = vadd.f32 %v2526, %v2464
    %v2528 = vadd.f32 %v2527, %v2465
    %v2529 = vadd.f32 %v2528, %v2466
    %v2530 = vadd.f32 %v2529, %v2467
    %v2531 = vadd.f32 %v2530, %v2468
    %v2532 = vadd.f32 %v2531, %v2469
    %v2533 = vadd.f32 %v2532, %v2470
    %v2534 = vadd.f32 %v2533, %v2471
    %v2535 = vadd.f32 %v2534, %v2472
    %v2536 = vadd.f32 %v2535, %v2473
    %v2537 = vadd.f32 %v2536, %v2474
    %v2538 = vadd.f32 %v2537, %v2475
    %v2539 = vadd.f32 %v2538, %v2476
    %v2540 = vadd.f32 %v2539, %v2477
    %v2541 = vadd.f32 %v2540, %v2478
    %v2542 = vadd.f32 %v2541, %v2479
    %v2543 = vadd.f32 %v2542, %v2480
    %v2544 = vadd.f32 %v2543, %v2481
    %v2545 = vadd.f32 %v2544, %v2482
    %v2546 = vadd.f32 %v2545, %v2483
    %v2547 = vadd.f32 %v2546, %v2484
    %v2548 = vadd.f32 %v2547, %v2485
    %v2549 = vadd.f32 %v2548, %v2486
    %v2550 = vadd.f32 %v2549, %v2487
    %v2551 = vadd.f32 %v2550, %v2488
    %v2552 = vadd.f32 %v2551, %v2489
    %v2553 = vadd.f32 %v2552, %v2490
    %v2554 = vadd.f32 %v2553, %v2491
    %v2555 = vadd.f32 %v2554, %v2492
    %v2556 = vadd.f32 %v2555, %v2493
    %v2557 = vadd.f32 %v2556, %v2494
    %v2558 = vadd.f32 %v2557, %v2495
    %v2559 = vadd.f32 %v2558, %v2496
    %v2560 = vadd.f32 %v2559, %v2497
    %v2561 = vadd.f32 %v2560, %v2498
    %v2562 = vadd.f32 %v2561, %v2499
    %v2563 = vadd.f32 %v2562, %v2500
    %v2564 = vadd.f32 %v2563, %v2501
    %v2565 = vadd.f32 %v2564, %v2502
    %v2566 = vadd.f32 %v2565, %v2503
    %v2567 = vadd.f32 %v2566, %v2504
    %v2568 = vadd.f32 %v2567, %v2505
    %v2569 = vadd.f32 %v2568, %v2506
    %v2570 = vadd.f32 %v2569, %v2507
    %v2571 = vadd.f32 %v2570, %v2508
    %v2572 = vadd.f32 %v2571, %v2509
    %v2573 = vadd.f32 %v2572, %v2510
    %v2574 = vadd.f32 %v2573, %v2511
    %v2575 = vadd.f32 %v2574, %v2512
    %v2576 = vadd.f32 %v2575, %v2513
    %v2577 = vadd.f32 %v2576, %v2514
    %v2578 = vadd.f32 %v2577, %v2515
    %v2579 = vadd.f32 %v2578, %v2516
    %v2580 = vadd.f32 %v2579, %v2517
    %v2581 = vadd.f32 %v2580, %v2518
    %v2582 = vadd.f32 %v2581, %v2519
    %v2583 = vadd.f32 %v2582, %v2520
    %v2584 = vadd.f32 %v2583, %v2521
    %v2585 = vadd.f32 %v2584, %v2522
    %v2586 = vadd.f32 %v2585, %v2523
    %2587 = vadd.xlane.f32.xlu0 %v2586
    %v2588 = vpop.xlane.xlu0 %2587
    %v2589 = vrot.slane %v2588, 4
    %v2590 = vadd.f32 %v2588, %v2589
    %v2591 = vrot.slane %v2590, 2
    %v2592 = vadd.f32 %v2590, %v2591
    %v2593 = vrot.slane %v2592, 1
    %v2594 = vadd.f32 %v2592, %v2593
    %s2595 = vtos %v2594
    %v2596 = vstv %s2595
    %v2597 = vadd.f32 %v2459, %v2596
    %2598 = vst [vmem:[%s5] sm:$0xff] %v2597
    %v2599 = vld [vmem:[%s6] sm:$0xff]
    %v2600 = vmul.f32 %v2395, %v1181
    %v2601 = vmul.f32 %v2396, %v1182
    %v2602 = vmul.f32 %v2397, %v1183
    %v2603 = vmul.f32 %v2398, %v1184
    %v2604 = vmul.f32 %v2399, %v1185
    %v2605 = vmul.f32 %v2400, %v1186
    %v2606 = vmul.f32 %v2401, %v1187
    %v2607 = vmul.f32 %v2402, %v1188
    %v2608 = vmul.f32 %v2403, %v1189
    %v2609 = vmul.f32 %v2404, %v1190
    %v2610 = vmul.f32 %v2405, %v1191
    %v2611 = vmul.f32 %v2406, %v1192
    %v2612 = vmul.f32 %v2407, %v1193
    %v2613 = vmul.f32 %v2408, %v1194
    %v2614 = vmul.f32 %v2409, %v1195
    %v2615 = vmul.f32 %v2410, %v1196
    %v2616 = vmul.f32 %v2411, %v1197
    %v2617 = vmul.f32 %v2412, %v1198
    %v2618 = vmul.f32 %v2413, %v1199
    %v2619 = vmul.f32 %v2414, %v1200
    %v2620 = vmul.f32 %v2415, %v1201
    %v2621 = vmul.f32 %v2416, %v1202
    %v2622 = vmul.f32 %v2417, %v1203
    %v2623 = vmul.f32 %v2418, %v1204
    %v2624 = vmul.f32 %v2419, %v1205
    %v2625 = vmul.f32 %v2420, %v1206
    %v2626 = vmul.f32 %v2421, %v1207
    %v2627 = vmul.f32 %v2422, %v1208
    %v2628 = vmul.f32 %v2423, %v1209
    %v2629 = vmul.f32 %v2424, %v1210
    %v2630 = vmul.f32 %v2425, %v1211
    %v2631 = vmul.f32 %v2426, %v1212
    %v2632 = vmul.f32 %v2427, %v1213
    %v2633 = vmul.f32 %v2428, %v1214
    %v2634 = vmul.f32 %v2429, %v1215
    %v2635 = vmul.f32 %v2430, %v1216
    %v2636 = vmul.f32 %v2431, %v1217
    %v2637 = vmul.f32 %v2432, %v1218
    %v2638 = vmul.f32 %v2433, %v1219
    %v2639 = vmul.f32 %v2434, %v1220
    %v2640 = vmul.f32 %v2435, %v1221
    %v2641 = vmul.f32 %v2436, %v1222
    %v2642 = vmul.f32 %v2437, %v1223
    %v2643 = vmul.f32 %v2438, %v1224
    %v2644 = vmul.f32 %v2439, %v1225
    %v2645 = vmul.f32 %v2440, %v1226
    %v2646 = vmul.f32 %v2441, %v1227
    %v2647 = vmul.f32 %v2442, %v1228
    %v2648 = vmul.f32 %v2443, %v1229
    %v2649 = vmul.f32 %v2444, %v1230
    %v2650 = vmul.f32 %v2445, %v1231
    %v2651 = vmul.f32 %v2446, %v1232
    %v2652 = vmul.f32 %v2447, %v1233
    %v2653 = vmul.f32 %v2448, %v1234
    %v2654 = vmul.f32 %v2449, %v1235
    %v2655 = vmul.f32 %v2450, %v1236
    %v2656 = vmul.f32 %v2451, %v1237
    %v2657 = vmul.f32 %v2452, %v1238
    %v2658 = vmul.f32 %v2453, %v1239
    %v2659 = vmul.f32 %v2454, %v1240
    %v2660 = vmul.f32 %v2455, %v1241
    %v2661 = vmul.f32 %v2456, %v1242
    %v2662 = vmul.f32 %v2457, %v1243
    %v2663 = vmul.f32 %v2458, %v1244
    %v2664 = vadd.f32 %v2600, %v2601
    %v2665 = vadd.f32 %v2664, %v2602
    %v2666 = vadd.f32 %v2665, %v2603
    %v2667 = vadd.f32 %v2666, %v2604
    %v2668 = vadd.f32 %v2667, %v2605
    %v2669 = vadd.f32 %v2668, %v2606
    %v2670 = vadd.f32 %v2669, %v2607
    %v2671 = vadd.f32 %v2670, %v2608
    %v2672 = vadd.f32 %v2671, %v2609
    %v2673 = vadd.f32 %v2672, %v2610
    %v2674 = vadd.f32 %v2673, %v2611
    %v2675 = vadd.f32 %v2674, %v2612
    %v2676 = vadd.f32 %v2675, %v2613
    %v2677 = vadd.f32 %v2676, %v2614
    %v2678 = vadd.f32 %v2677, %v2615
    %v2679 = vadd.f32 %v2678, %v2616
    %v2680 = vadd.f32 %v2679, %v2617
    %v2681 = vadd.f32 %v2680, %v2618
    %v2682 = vadd.f32 %v2681, %v2619
    %v2683 = vadd.f32 %v2682, %v2620
    %v2684 = vadd.f32 %v2683, %v2621
    %v2685 = vadd.f32 %v2684, %v2622
    %v2686 = vadd.f32 %v2685, %v2623
    %v2687 = vadd.f32 %v2686, %v2624
    %v2688 = vadd.f32 %v2687, %v2625
    %v2689 = vadd.f32 %v2688, %v2626
    %v2690 = vadd.f32 %v2689, %v2627
    %v2691 = vadd.f32 %v2690, %v2628
    %v2692 = vadd.f32 %v2691, %v2629
    %v2693 = vadd.f32 %v2692, %v2630
    %v2694 = vadd.f32 %v2693, %v2631
    %v2695 = vadd.f32 %v2694, %v2632
    %v2696 = vadd.f32 %v2695, %v2633
    %v2697 = vadd.f32 %v2696, %v2634
    %v2698 = vadd.f32 %v2697, %v2635
    %v2699 = vadd.f32 %v2698, %v2636
    %v2700 = vadd.f32 %v2699, %v2637
    %v2701 = vadd.f32 %v2700, %v2638
    %v2702 = vadd.f32 %v2701, %v2639
    %v2703 = vadd.f32 %v2702, %v2640
    %v2704 = vadd.f32 %v2703, %v2641
    %v2705 = vadd.f32 %v2704, %v2642
    %v2706 = vadd.f32 %v2705, %v2643
    %v2707 = vadd.f32 %v2706, %v2644
    %v2708 = vadd.f32 %v2707, %v2645
    %v2709 = vadd.f32 %v2708, %v2646
    %v2710 = vadd.f32 %v2709, %v2647
    %v2711 = vadd.f32 %v2710, %v2648
    %v2712 = vadd.f32 %v2711, %v2649
    %v2713 = vadd.f32 %v2712, %v2650
    %v2714 = vadd.f32 %v2713, %v2651
    %v2715 = vadd.f32 %v2714, %v2652
    %v2716 = vadd.f32 %v2715, %v2653
    %v2717 = vadd.f32 %v2716, %v2654
    %v2718 = vadd.f32 %v2717, %v2655
    %v2719 = vadd.f32 %v2718, %v2656
    %v2720 = vadd.f32 %v2719, %v2657
    %v2721 = vadd.f32 %v2720, %v2658
    %v2722 = vadd.f32 %v2721, %v2659
    %v2723 = vadd.f32 %v2722, %v2660
    %v2724 = vadd.f32 %v2723, %v2661
    %v2725 = vadd.f32 %v2724, %v2662
    %v2726 = vadd.f32 %v2725, %v2663
    %2727 = vadd.xlane.f32.xlu0 %v2726
    %v2728 = vpop.xlane.xlu0 %2727
    %v2729 = vrot.slane %v2728, 4
    %v2730 = vadd.f32 %v2728, %v2729
    %v2731 = vrot.slane %v2730, 2
    %v2732 = vadd.f32 %v2730, %v2731
    %v2733 = vrot.slane %v2732, 1
    %v2734 = vadd.f32 %v2732, %v2733
    %s2735 = vtos %v2734
    %v2736 = vstv %s2735
    %v2737 = vadd.f32 %v2599, %v2736
    %2738 = vst [vmem:[%s6] sm:$0xff] %v2737
    // Predicated region
    $region26: #{attnwalk_loss.1} parent=1 // pred_check
      _
    $region27: #{attnwalk_loss.1} parent=1 // pred_check_branch
      %2740 = sbr.rel (0) target = $region29
    $region28: #{attnwalk_loss.1} parent=1 // pred_region
      _
    $region29: #{attnwalk_loss.1} parent=1 // pred_fallthru
      _
    // Predicated region
    $region30: #{attnwalk_loss.1} parent=1 // pred_check
      _
    $region31: #{attnwalk_loss.1} parent=1 // pred_check_branch
      %2742 = sbr.rel (0) target = $region33
    $region32: #{attnwalk_loss.1} parent=1 // pred_region
      _
    $region33: #{attnwalk_loss.1} parent=1 // pred_fallthru
      _
    // Predicated region
    $region34: #{attnwalk_loss.1} parent=1 // pred_check
      _
    $region35: #{attnwalk_loss.1} parent=1 // pred_check_branch
      %2744 = sbr.rel (0) target = $region37
    $region36: #{attnwalk_loss.1} parent=1 // pred_region
      _
    $region37: #{attnwalk_loss.1} parent=1 // pred_fallthru
      _
    // Predicated region
    $region38: #{attnwalk_loss.1} parent=1 // pred_check
      _
    $region39: #{attnwalk_loss.1} parent=1 // pred_check_branch
      %2746 = sbr.rel (0) target = $region41
    $region40: #{attnwalk_loss.1} parent=1 // pred_region
      _
    $region41: #{attnwalk_loss.1} parent=1 // pred_fallthru
      _
    %2747 = vsyncpa [#allocation5], 1

</llo_original>
